<compile_context>
chip_gen: v7x
topology: tpu7x:2x2x1
jax: 0.10.0
libtpu: 0.0.40
codegen_flags: <defaults>
</compile_context>

<pallas_src>
import functools
import math

import jax
import jax.numpy as jnp
from jax.experimental import pallas as pl
from jax.experimental.pallas import tpu as pltpu


def _static_roll(t, shift):
    """roll(t, shift)[..., j] = t[..., (j - shift) % n]; static shift, last axis."""
    n = t.shape[-1]
    shift = shift % n
    if shift == 0:
        return t
    if n % 128 == 0:
        return pltpu.roll(t, shift, axis=-1)          # lane-dense: XLU rotate
    # Sub-128 lane width (toy config): same rotation as two lane slices + concat.
    return jnp.concatenate([t[:, n - shift:], t[:, :n - shift]], axis=-1)


def _gqa_kernel(x_ref, wqkv_ref, wo_ref, cos_ref, sin_lo_ref, sin_hi_ref,
                o_ref, acc_ref, *, num_heads, num_kv_heads, head_dim):
    S = x_ref.shape[1]
    D = num_heads * head_dim
    d_kv = num_kv_heads * head_dim
    num_rep = num_heads // num_kv_heads
    half = head_dim // 2
    scale = 1.0 / math.sqrt(head_dim)

    x = x_ref[0]                                          # (S, D) bf16
    # Fused QKV projection: ONE wide MXU matmul (bf16 operands, f32 accumulate).
    qkv = jnp.dot(x, wqkv_ref[...], preferred_element_type=jnp.float32)
    q = qkv[:, :D]                                        # (S, D)     f32
    k = qkv[:, D:D + d_kv]                                # (S, d_kv)  f32
    v = qkv[:, D + d_kv:]                                 # (S, d_kv)  f32

    # Full-width RoPE (f32 elementwise).  sin_lo / sin_hi carry the rotate_half
    # sign and the half-lane selection, so
    #   rotate_half(t) * sin == roll(t, -half) * sin_lo + roll(t, +half) * sin_hi
    cos = cos_ref[...]
    sin_lo = sin_lo_ref[...]
    sin_hi = sin_hi_ref[...]
    q = (q * cos
         + _static_roll(q, -half) * sin_lo
         + _static_roll(q, half) * sin_hi) * scale        # fold 1/sqrt(hd) into q
    k = (k * cos[:, :d_kv]
         + _static_roll(k, -half) * sin_lo[:, :d_kv]
         + _static_roll(k, half) * sin_hi[:, :d_kv])

    q = q.astype(jnp.bfloat16)
    k = k.astype(jnp.bfloat16)
    v = v.astype(jnp.bfloat16)
    wo = wo_ref[...]                                      # (D, D) bf16

    # Causal additive bias, built once per grid step (outside the head loop).
    row = jax.lax.broadcasted_iota(jnp.int32, (S, S), 0)
    col = jax.lax.broadcasted_iota(jnp.int32, (S, S), 1)
    bias = jnp.where(col <= row, 0.0, -1e30).astype(jnp.float32)

    acc_ref[...] = jnp.zeros_like(acc_ref)
    # Toy head count -> full unroll.  TODO(synk): lax.fori_loop for real head counts.
    for h in range(num_heads):
        g = h // num_rep                                  # GQA: shared KV head
        q_h = q[:, h * head_dim:(h + 1) * head_dim]       # (S, hd)
        k_h = k[:, g * head_dim:(g + 1) * head_dim]       # (S, hd)
        v_h = v[:, g * head_dim:(g + 1) * head_dim]       # (S, hd)

        # scores = q_h @ k_h^T (contraction on head_dim), f32 accumulate.
        s = jax.lax.dot_general(q_h, k_h, (((1,), (1,)), ((), ())),
                                preferred_element_type=jnp.float32) + bias
        m = jnp.max(s, axis=-1, keepdims=True)
        e = jnp.exp(s - m)                                # f32, un-normalized
        l = jnp.sum(e, axis=-1, keepdims=True)
        pv = jnp.dot(e.astype(jnp.bfloat16), v_h,
                     preferred_element_type=jnp.float32)  # (S, hd)
        o_h = pv * pl.reciprocal(l, approx=True)          # deferred softmax norm
        # Output projection folded into the head loop: acc += o_h @ wo[rows_h].
        acc_ref[...] += jnp.dot(o_h.astype(jnp.bfloat16),
                                wo[h * head_dim:(h + 1) * head_dim, :],
                                preferred_element_type=jnp.float32)

    o_ref[0] = acc_ref[...].astype(o_ref.dtype)


def gqa_forward(x, wq, wk, wv, wo, cos, sin, *, num_heads, num_kv_heads):
    """x: (B,S,D).  wq:(D,D), wk/wv:(D,d_kv), wo:(D,D) in (in,out) layout.
    cos/sin: (S, head_dim).  Returns (B,S,D) f32."""
    B, S, D = x.shape
    head_dim = D // num_heads
    half = head_dim // 2
    d_kv = num_kv_heads * head_dim
    d_qkv = D + 2 * d_kv
    assert wq.shape == (D, D) and wk.shape == (D, d_kv) and wv.shape == (D, d_kv)
    assert wo.shape == (D, D)
    assert cos.shape == (S, head_dim) and sin.shape == (S, head_dim)

    # Layout plumbing in the wrapper (per review): fused bf16 QKV weight, bf16
    # x / wo, and full-width f32 RoPE tables with the rotate_half sign and the
    # half-lane selection folded in.
    x_bf = x.astype(jnp.bfloat16)
    wqkv = jnp.concatenate([wq, wk, wv], axis=1).astype(jnp.bfloat16)   # (D, d_qkv)
    wo_bf = wo.astype(jnp.bfloat16)
    lo = jnp.arange(head_dim) < half
    cos_t = jnp.tile(cos, (1, num_heads)).astype(jnp.float32)           # (S, D)
    sin_lo = jnp.tile(jnp.where(lo, -sin, 0.0), (1, num_heads)).astype(jnp.float32)
    sin_hi = jnp.tile(jnp.where(lo, 0.0, sin), (1, num_heads)).astype(jnp.float32)

    kernel = functools.partial(_gqa_kernel, num_heads=num_heads,
                               num_kv_heads=num_kv_heads, head_dim=head_dim)

    flops = (2 * B * S * D * d_qkv                    # fused QKV projection
             + 4 * B * num_heads * S * S * head_dim   # QK^T + PV
             + 2 * B * S * D * D)                     # output projection
    bytes_accessed = (2 * (x_bf.size + wqkv.size + wo_bf.size)
                      + 4 * 3 * S * D + 4 * B * S * D)

    return pl.pallas_call(
        kernel,
        out_shape=jax.ShapeDtypeStruct((B, S, D), jnp.float32),
        grid_spec=pltpu.PrefetchScalarGridSpec(
            num_scalar_prefetch=0,
            grid=(B,),                                     # batch-parallel steps
            in_specs=[
                pl.BlockSpec((1, S, D), lambda b: (b, 0, 0)),    # x (per-batch)
                pl.BlockSpec((D, d_qkv), lambda b: (0, 0)),      # fused wqkv
                pl.BlockSpec((D, D), lambda b: (0, 0)),          # wo
                pl.BlockSpec((S, D), lambda b: (0, 0)),          # cos (tiled)
                pl.BlockSpec((S, D), lambda b: (0, 0)),          # sin (1st-half lanes, signed)
                pl.BlockSpec((S, D), lambda b: (0, 0)),          # sin (2nd-half lanes)
            ],
            out_specs=pl.BlockSpec((1, S, D), lambda b: (b, 0, 0)),
            scratch_shapes=[pltpu.VMEM((S, D), jnp.float32)],    # wo-proj accumulator
        ),
        compiler_params=pltpu.CompilerParams(
            dimension_semantics=("parallel",),
            vmem_limit_bytes=32 * 1024 * 1024,
        ),
        cost_estimate=pl.CostEstimate(
            flops=flops,
            transcendentals=B * num_heads * S * (S + 1),
            bytes_accessed=bytes_accessed,
        ),
    )(x_bf, wqkv, wo_bf, cos_t, sin_lo, sin_hi)


def _reference(x, wq, wk, wv, wo, cos, sin, num_heads, num_kv_heads):
    """Plain-JAX f32 mirror of the PyTorch GroupedQueryAttention forward."""
    B, S, D = x.shape
    head_dim = D // num_heads
    num_rep = num_heads // num_kv_heads
    q = (x @ wq).reshape(B, S, num_heads, head_dim).transpose(0, 2, 1, 3)
    k = (x @ wk).reshape(B, S, num_kv_heads, head_dim).transpose(0, 2, 1, 3)
    v = (x @ wv).reshape(B, S, num_kv_heads, head_dim).transpose(0, 2, 1, 3)

    def rotate_half(t):
        half = t.shape[-1] // 2
        return jnp.concatenate([-t[..., half:], t[..., :half]], axis=-1)

    q = q * cos + rotate_half(q) * sin
    k = k * cos + rotate_half(k) * sin
    k = jnp.repeat(k, num_rep, axis=1)                 # repeat_kv
    v = jnp.repeat(v, num_rep, axis=1)
    att = (q @ jnp.swapaxes(k, -2, -1)) / math.sqrt(head_dim)
    mask = jnp.triu(jnp.ones((S, S), dtype=bool), k=1)
    att = jnp.where(mask, -jnp.inf, att)
    w = jax.nn.softmax(att, axis=-1)
    out = (w @ v).transpose(0, 2, 1, 3).reshape(B, S, D)
    return out @ wo


if __name__ == "__main__":
    # config: num_dims=32, num_heads=4, num_kv_heads=2 (head_dim=8), batch=2, seq=8
    batch, seq = 2, 8
    num_dims, num_heads, num_kv_heads = 32, 4, 2
    head_dim = num_dims // num_heads
    d_kv = num_kv_heads * head_dim

    key = jax.random.PRNGKey(0)
    kx, kq, kk, kv, ko = jax.random.split(key, 5)

    def bf16_round(a):  # kernel uses bf16 operands; give the f32 ref the same values
        return a.astype(jnp.bfloat16).astype(jnp.float32)

    x = bf16_round(jax.random.normal(kx, (batch, seq, num_dims), jnp.float32))

    # PyTorch inits: wq/wk/wv ~ N(0, 1/sqrt(D)); wo ~ default nn.Linear uniform.
    # Stored transposed, i.e. (in, out), so x @ W == torch's x @ W.T.
    std = 1.0 / math.sqrt(num_dims)
    wq = bf16_round((std * jax.random.normal(kq, (num_dims, num_dims), jnp.float32)).T)
    wk = bf16_round((std * jax.random.normal(kk, (d_kv, num_dims), jnp.float32)).T)
    wv = bf16_round((std * jax.random.normal(kv, (d_kv, num_dims), jnp.float32)).T)
    bound = 1.0 / math.sqrt(num_dims)
    wo = bf16_round(jax.random.uniform(ko, (num_dims, num_dims), jnp.float32,
                                       -bound, bound).T)

    # RoPE tables (rotate_half convention), shape (S, head_dim), f32.
    pos = jnp.arange(seq, dtype=jnp.float32)[:, None]
    inv_freq = 1.0 / (10000.0 ** (jnp.arange(0, head_dim, 2,
                                             dtype=jnp.float32) / head_dim))
    ang = pos * inv_freq[None, :]
    cos = jnp.concatenate([jnp.cos(ang), jnp.cos(ang)], axis=-1)
    sin = jnp.concatenate([jnp.sin(ang), jnp.sin(ang)], axis=-1)

    out = gqa_forward(x, wq, wk, wv, wo, cos, sin,
                      num_heads=num_heads, num_kv_heads=num_kv_heads)
    out = jax.block_until_ready(out)

    ref = _reference(x, wq, wk, wv, wo, cos, sin, num_heads, num_kv_heads)
    assert out.shape == (batch, seq, num_dims)
    # bf16 MXU operands (q/k, probabilities, attn) vs. the f32 reference:
    # ~1e-2-level divergence expected -> loosened tolerance (per review).
    assert jnp.allclose(out, ref, atol=3e-2, rtol=3e-2), \
        f"max abs diff = {float(jnp.max(jnp.abs(out - ref)))}"

    print("KERNEL_OK")
</pallas_src>

<mosaic_0001>
module attributes {stable_mosaic.version = 11 : i64} {
  func.func @_gqa_kernel(%arg0: i32, %arg1: memref<1x8x32xbf16, #tpu.memory_space<vmem>>, %arg2: memref<32x64xbf16, #tpu.memory_space<vmem>>, %arg3: memref<32x32xbf16, #tpu.memory_space<vmem>>, %arg4: memref<8x32xf32, #tpu.memory_space<vmem>>, %arg5: memref<8x32xf32, #tpu.memory_space<vmem>>, %arg6: memref<8x32xf32, #tpu.memory_space<vmem>>, %arg7: memref<1x8x32xf32, #tpu.memory_space<vmem>>, %arg8: memref<8x32xf32, #tpu.memory_space<vmem>>) attributes {dimension_semantics = [#tpu.dimension_semantics<parallel>], iteration_bounds = array<i64: 2>, scalar_prefetch = 0 : i64, scratch_operands = 1 : i64, tpu.core_type = #tpu.core_type<tc>, window_params = [{transform_indices = @transform_0, window_bounds = array<i64: 1, 8, 32>}, {pipeline_mode = #tpu.pipeline_mode<synchronous>, transform_indices = @transform_1, window_bounds = array<i64: 32, 64>}, {pipeline_mode = #tpu.pipeline_mode<synchronous>, transform_indices = @transform_2, window_bounds = array<i64: 32, 32>}, {pipeline_mode = #tpu.pipeline_mode<synchronous>, transform_indices = @transform_3, window_bounds = array<i64: 8, 32>}, {pipeline_mode = #tpu.pipeline_mode<synchronous>, transform_indices = @transform_4, window_bounds = array<i64: 8, 32>}, {pipeline_mode = #tpu.pipeline_mode<synchronous>, transform_indices = @transform_5, window_bounds = array<i64: 8, 32>}, {transform_indices = @transform_6, window_bounds = array<i64: 1, 8, 32>}]} {
    %c0 = arith.constant 0 : index
    %c0_0 = arith.constant 0 : index
    %c0_1 = arith.constant 0 : index
    %0 = vector.load %arg1[%c0, %c0_0, %c0_1] : memref<1x8x32xbf16, #tpu.memory_space<vmem>>, vector<1x8x32xbf16>
    %1 = vector.shape_cast %0 : vector<1x8x32xbf16> to vector<8x32xbf16>
    %c0_2 = arith.constant 0 : index
    %c0_3 = arith.constant 0 : index
    %2 = vector.load %arg2[%c0_2, %c0_3] : memref<32x64xbf16, #tpu.memory_space<vmem>>, vector<32x64xbf16>
    %cst = arith.constant dense<0.000000e+00> : vector<8x64xf32>
    %3 = tpu.matmul %1, %2, %cst {dimension_numbers = #tpu.dot_dimension_numbers<[1], [0], [0], [1], [0, 0, 1, 1], [], []>} : vector<8x32xbf16>, vector<32x64xbf16>, vector<8x64xf32> -> vector<8x64xf32>
    %4 = vector.extract_strided_slice %3 {offsets = [0, 0], sizes = [8, 32], strides = [1, 1]} : vector<8x64xf32> to vector<8x32xf32>
    %5 = vector.extract_strided_slice %3 {offsets = [0, 32], sizes = [8, 16], strides = [1, 1]} : vector<8x64xf32> to vector<8x16xf32>
    %6 = vector.extract_strided_slice %3 {offsets = [0, 48], sizes = [8, 16], strides = [1, 1]} : vector<8x64xf32> to vector<8x16xf32>
    %c0_4 = arith.constant 0 : index
    %c0_5 = arith.constant 0 : index
    %7 = vector.load %arg4[%c0_4, %c0_5] : memref<8x32xf32, #tpu.memory_space<vmem>>, vector<8x32xf32>
    %c0_6 = arith.constant 0 : index
    %c0_7 = arith.constant 0 : index
    %8 = vector.load %arg5[%c0_6, %c0_7] : memref<8x32xf32, #tpu.memory_space<vmem>>, vector<8x32xf32>
    %c0_8 = arith.constant 0 : index
    %c0_9 = arith.constant 0 : index
    %9 = vector.load %arg6[%c0_8, %c0_9] : memref<8x32xf32, #tpu.memory_space<vmem>>, vector<8x32xf32>
    %10 = arith.mulf %4, %7 : vector<8x32xf32>
    %11 = vector.extract_strided_slice %4 {offsets = [0, 4], sizes = [8, 28], strides = [1, 1]} : vector<8x32xf32> to vector<8x28xf32>
    %12 = vector.extract_strided_slice %4 {offsets = [0, 0], sizes = [8, 4], strides = [1, 1]} : vector<8x32xf32> to vector<8x4xf32>
    %13 = tpu.concatenate %11, %12 in 1 : vector<8x28xf32>, vector<8x4xf32> -> vector<8x32xf32>
    %14 = arith.mulf %13, %8 : vector<8x32xf32>
    %15 = arith.addf %10, %14 : vector<8x32xf32>
    %16 = vector.extract_strided_slice %4 {offsets = [0, 28], sizes = [8, 4], strides = [1, 1]} : vector<8x32xf32> to vector<8x4xf32>
    %17 = vector.extract_strided_slice %4 {offsets = [0, 0], sizes = [8, 28], strides = [1, 1]} : vector<8x32xf32> to vector<8x28xf32>
    %18 = tpu.concatenate %16, %17 in 1 : vector<8x4xf32>, vector<8x28xf32> -> vector<8x32xf32>
    %19 = arith.mulf %18, %9 : vector<8x32xf32>
    %20 = arith.addf %15, %19 : vector<8x32xf32>
    %cst_10 = arith.constant 0.353553385 : f32
    %21 = vector.broadcast %cst_10 : f32 to vector<8x32xf32>
    %22 = arith.mulf %20, %21 : vector<8x32xf32>
    %23 = vector.extract_strided_slice %7 {offsets = [0, 0], sizes = [8, 16], strides = [1, 1]} : vector<8x32xf32> to vector<8x16xf32>
    %24 = arith.mulf %5, %23 : vector<8x16xf32>
    %25 = vector.extract_strided_slice %5 {offsets = [0, 4], sizes = [8, 12], strides = [1, 1]} : vector<8x16xf32> to vector<8x12xf32>
    %26 = vector.extract_strided_slice %5 {offsets = [0, 0], sizes = [8, 4], strides = [1, 1]} : vector<8x16xf32> to vector<8x4xf32>
    %27 = tpu.concatenate %25, %26 in 1 : vector<8x12xf32>, vector<8x4xf32> -> vector<8x16xf32>
    %28 = vector.extract_strided_slice %8 {offsets = [0, 0], sizes = [8, 16], strides = [1, 1]} : vector<8x32xf32> to vector<8x16xf32>
    %29 = arith.mulf %27, %28 : vector<8x16xf32>
    %30 = arith.addf %24, %29 : vector<8x16xf32>
    %31 = vector.extract_strided_slice %5 {offsets = [0, 12], sizes = [8, 4], strides = [1, 1]} : vector<8x16xf32> to vector<8x4xf32>
    %32 = vector.extract_strided_slice %5 {offsets = [0, 0], sizes = [8, 12], strides = [1, 1]} : vector<8x16xf32> to vector<8x12xf32>
    %33 = tpu.concatenate %31, %32 in 1 : vector<8x4xf32>, vector<8x12xf32> -> vector<8x16xf32>
    %34 = vector.extract_strided_slice %9 {offsets = [0, 0], sizes = [8, 16], strides = [1, 1]} : vector<8x32xf32> to vector<8x16xf32>
    %35 = arith.mulf %33, %34 : vector<8x16xf32>
    %36 = arith.addf %30, %35 : vector<8x16xf32>
    %37 = arith.truncf %22 : vector<8x32xf32> to vector<8x32xbf16>
    %38 = arith.truncf %36 : vector<8x16xf32> to vector<8x16xbf16>
    %39 = arith.truncf %6 : vector<8x16xf32> to vector<8x16xbf16>
    %c0_11 = arith.constant 0 : index
    %c0_12 = arith.constant 0 : index
    %40 = vector.load %arg3[%c0_11, %c0_12] : memref<32x32xbf16, #tpu.memory_space<vmem>>, vector<32x32xbf16>
    %41 = tpu.iota {dimensions = array<i32: 0>} : vector<8x8xi32>
    %42 = tpu.iota {dimensions = array<i32: 1>} : vector<8x8xi32>
    %43 = arith.cmpi sle, %42, %41 : vector<8x8xi32>
    %cst_13 = arith.constant 0.000000e+00 : f32
    %cst_14 = arith.constant -1.000000e+30 : f32
    %44 = vector.broadcast %cst_13 : f32 to vector<8x8xf32>
    %45 = vector.broadcast %cst_14 : f32 to vector<8x8xf32>
    %46 = arith.select %43, %44, %45 : vector<8x8xi1>, vector<8x8xf32>
    %cst_15 = arith.constant 0.000000e+00 : f32
    %47 = vector.broadcast %cst_15 : f32 to vector<8x32xf32>
    %c0_16 = arith.constant 0 : index
    %c0_17 = arith.constant 0 : index
    %48 = vector.load %arg8[%c0_16, %c0_17] : memref<8x32xf32, #tpu.memory_space<vmem>>, vector<8x32xf32>
    tpu.vector_store %arg8[%c0_16, %c0_17], %47 {strides = array<i32>} : memref<8x32xf32, #tpu.memory_space<vmem>>, vector<8x32xf32>,
    %49 = vector.extract_strided_slice %37 {offsets = [0, 0], sizes = [8, 8], strides = [1, 1]} : vector<8x32xbf16> to vector<8x8xbf16>
    %50 = vector.extract_strided_slice %38 {offsets = [0, 0], sizes = [8, 8], strides = [1, 1]} : vector<8x16xbf16> to vector<8x8xbf16>
    %51 = vector.extract_strided_slice %39 {offsets = [0, 0], sizes = [8, 8], strides = [1, 1]} : vector<8x16xbf16> to vector<8x8xbf16>
    %cst_18 = arith.constant dense<0.000000e+00> : vector<8x8xf32>
    %52 = tpu.matmul %49, %50, %cst_18 {dimension_numbers = #tpu.dot_dimension_numbers<[1], [1], [0], [0], [0, 0, 1, 0], [], []>} : vector<8x8xbf16>, vector<8x8xbf16>, vector<8x8xf32> -> vector<8x8xf32>
    %53 = arith.addf %52, %46 : vector<8x8xf32>
    %cst_19 = arith.constant dense<0xFF800000> : vector<8xf32>
    %54 = vector.multi_reduction <maximumf>, %53, %cst_19 [1] : vector<8x8xf32> to vector<8xf32>
    %55 = vector.shape_cast %54 : vector<8xf32> to vector<8x1xf32>
    %56 = vector.broadcast %55 : vector<8x1xf32> to vector<8x8xf32>
    %57 = arith.subf %53, %56 : vector<8x8xf32>
    %58 = math.exp %57 : vector<8x8xf32>
    %cst_20 = arith.constant dense<0.000000e+00> : vector<8xf32>
    %59 = vector.multi_reduction <add>, %58, %cst_20 [1] : vector<8x8xf32> to vector<8xf32>
    %60 = vector.shape_cast %59 : vector<8xf32> to vector<8x1xf32>
    %61 = arith.truncf %58 : vector<8x8xf32> to vector<8x8xbf16>
    %cst_21 = arith.constant dense<0.000000e+00> : vector<8x8xf32>
    %62 = tpu.matmul %61, %51, %cst_21 {dimension_numbers = #tpu.dot_dimension_numbers<[1], [0], [0], [1], [0, 0, 1, 1], [], []>} : vector<8x8xbf16>, vector<8x8xbf16>, vector<8x8xf32> -> vector<8x8xf32>
    %63 = tpu.reciprocal %60 {approx = true} : vector<8x1xf32> -> vector<8x1xf32>
    %64 = vector.broadcast %63 : vector<8x1xf32> to vector<8x8xf32>
    %65 = arith.mulf %62, %64 : vector<8x8xf32>
    %c0_22 = arith.constant 0 : index
    %c0_23 = arith.constant 0 : index
    %66 = vector.load %arg8[%c0_22, %c0_23] : memref<8x32xf32, #tpu.memory_space<vmem>>, vector<8x32xf32>
    %67 = arith.truncf %65 : vector<8x8xf32> to vector<8x8xbf16>
    %68 = vector.extract_strided_slice %40 {offsets = [0, 0], sizes = [8, 32], strides = [1, 1]} : vector<32x32xbf16> to vector<8x32xbf16>
    %cst_24 = arith.constant dense<0.000000e+00> : vector<8x32xf32>
    %69 = tpu.matmul %67, %68, %cst_24 {dimension_numbers = #tpu.dot_dimension_numbers<[1], [0], [0], [1], [0, 0, 1, 1], [], []>} : vector<8x8xbf16>, vector<8x32xbf16>, vector<8x32xf32> -> vector<8x32xf32>
    %70 = arith.addf %66, %69 : vector<8x32xf32>
    %c0_25 = arith.constant 0 : index
    %c0_26 = arith.constant 0 : index
    %71 = vector.load %arg8[%c0_25, %c0_26] : memref<8x32xf32, #tpu.memory_space<vmem>>, vector<8x32xf32>
    tpu.vector_store %arg8[%c0_25, %c0_26], %70 {strides = array<i32>} : memref<8x32xf32, #tpu.memory_space<vmem>>, vector<8x32xf32>,
    %72 = vector.extract_strided_slice %37 {offsets = [0, 8], sizes = [8, 8], strides = [1, 1]} : vector<8x32xbf16> to vector<8x8xbf16>
    %73 = vector.extract_strided_slice %38 {offsets = [0, 0], sizes = [8, 8], strides = [1, 1]} : vector<8x16xbf16> to vector<8x8xbf16>
    %74 = vector.extract_strided_slice %39 {offsets = [0, 0], sizes = [8, 8], strides = [1, 1]} : vector<8x16xbf16> to vector<8x8xbf16>
    %cst_27 = arith.constant dense<0.000000e+00> : vector<8x8xf32>
    %75 = tpu.matmul %72, %73, %cst_27 {dimension_numbers = #tpu.dot_dimension_numbers<[1], [1], [0], [0], [0, 0, 1, 0], [], []>} : vector<8x8xbf16>, vector<8x8xbf16>, vector<8x8xf32> -> vector<8x8xf32>
    %76 = arith.addf %75, %46 : vector<8x8xf32>
    %cst_28 = arith.constant dense<0xFF800000> : vector<8xf32>
    %77 = vector.multi_reduction <maximumf>, %76, %cst_28 [1] : vector<8x8xf32> to vector<8xf32>
    %78 = vector.shape_cast %77 : vector<8xf32> to vector<8x1xf32>
    %79 = vector.broadcast %78 : vector<8x1xf32> to vector<8x8xf32>
    %80 = arith.subf %76, %79 : vector<8x8xf32>
    %81 = math.exp %80 : vector<8x8xf32>
    %cst_29 = arith.constant dense<0.000000e+00> : vector<8xf32>
    %82 = vector.multi_reduction <add>, %81, %cst_29 [1] : vector<8x8xf32> to vector<8xf32>
    %83 = vector.shape_cast %82 : vector<8xf32> to vector<8x1xf32>
    %84 = arith.truncf %81 : vector<8x8xf32> to vector<8x8xbf16>
    %cst_30 = arith.constant dense<0.000000e+00> : vector<8x8xf32>
    %85 = tpu.matmul %84, %74, %cst_30 {dimension_numbers = #tpu.dot_dimension_numbers<[1], [0], [0], [1], [0, 0, 1, 1], [], []>} : vector<8x8xbf16>, vector<8x8xbf16>, vector<8x8xf32> -> vector<8x8xf32>
    %86 = tpu.reciprocal %83 {approx = true} : vector<8x1xf32> -> vector<8x1xf32>
    %87 = vector.broadcast %86 : vector<8x1xf32> to vector<8x8xf32>
    %88 = arith.mulf %85, %87 : vector<8x8xf32>
    %c0_31 = arith.constant 0 : index
    %c0_32 = arith.constant 0 : index
    %89 = vector.load %arg8[%c0_31, %c0_32] : memref<8x32xf32, #tpu.memory_space<vmem>>, vector<8x32xf32>
    %90 = arith.truncf %88 : vector<8x8xf32> to vector<8x8xbf16>
    %91 = vector.extract_strided_slice %40 {offsets = [8, 0], sizes = [8, 32], strides = [1, 1]} : vector<32x32xbf16> to vector<8x32xbf16>
    %cst_33 = arith.constant dense<0.000000e+00> : vector<8x32xf32>
    %92 = tpu.matmul %90, %91, %cst_33 {dimension_numbers = #tpu.dot_dimension_numbers<[1], [0], [0], [1], [0, 0, 1, 1], [], []>} : vector<8x8xbf16>, vector<8x32xbf16>, vector<8x32xf32> -> vector<8x32xf32>
    %93 = arith.addf %89, %92 : vector<8x32xf32>
    %c0_34 = arith.constant 0 : index
    %c0_35 = arith.constant 0 : index
    %94 = vector.load %arg8[%c0_34, %c0_35] : memref<8x32xf32, #tpu.memory_space<vmem>>, vector<8x32xf32>
    tpu.vector_store %arg8[%c0_34, %c0_35], %93 {strides = array<i32>} : memref<8x32xf32, #tpu.memory_space<vmem>>, vector<8x32xf32>,
    %95 = vector.extract_strided_slice %37 {offsets = [0, 16], sizes = [8, 8], strides = [1, 1]} : vector<8x32xbf16> to vector<8x8xbf16>
    %96 = vector.extract_strided_slice %38 {offsets = [0, 8], sizes = [8, 8], strides = [1, 1]} : vector<8x16xbf16> to vector<8x8xbf16>
    %97 = vector.extract_strided_slice %39 {offsets = [0, 8], sizes = [8, 8], strides = [1, 1]} : vector<8x16xbf16> to vector<8x8xbf16>
    %cst_36 = arith.constant dense<0.000000e+00> : vector<8x8xf32>
    %98 = tpu.matmul %95, %96, %cst_36 {dimension_numbers = #tpu.dot_dimension_numbers<[1], [1], [0], [0], [0, 0, 1, 0], [], []>} : vector<8x8xbf16>, vector<8x8xbf16>, vector<8x8xf32> -> vector<8x8xf32>
    %99 = arith.addf %98, %46 : vector<8x8xf32>
    %cst_37 = arith.constant dense<0xFF800000> : vector<8xf32>
    %100 = vector.multi_reduction <maximumf>, %99, %cst_37 [1] : vector<8x8xf32> to vector<8xf32>
    %101 = vector.shape_cast %100 : vector<8xf32> to vector<8x1xf32>
    %102 = vector.broadcast %101 : vector<8x1xf32> to vector<8x8xf32>
    %103 = arith.subf %99, %102 : vector<8x8xf32>
    %104 = math.exp %103 : vector<8x8xf32>
    %cst_38 = arith.constant dense<0.000000e+00> : vector<8xf32>
    %105 = vector.multi_reduction <add>, %104, %cst_38 [1] : vector<8x8xf32> to vector<8xf32>
    %106 = vector.shape_cast %105 : vector<8xf32> to vector<8x1xf32>
    %107 = arith.truncf %104 : vector<8x8xf32> to vector<8x8xbf16>
    %cst_39 = arith.constant dense<0.000000e+00> : vector<8x8xf32>
    %108 = tpu.matmul %107, %97, %cst_39 {dimension_numbers = #tpu.dot_dimension_numbers<[1], [0], [0], [1], [0, 0, 1, 1], [], []>} : vector<8x8xbf16>, vector<8x8xbf16>, vector<8x8xf32> -> vector<8x8xf32>
    %109 = tpu.reciprocal %106 {approx = true} : vector<8x1xf32> -> vector<8x1xf32>
    %110 = vector.broadcast %109 : vector<8x1xf32> to vector<8x8xf32>
    %111 = arith.mulf %108, %110 : vector<8x8xf32>
    %c0_40 = arith.constant 0 : index
    %c0_41 = arith.constant 0 : index
    %112 = vector.load %arg8[%c0_40, %c0_41] : memref<8x32xf32, #tpu.memory_space<vmem>>, vector<8x32xf32>
    %113 = arith.truncf %111 : vector<8x8xf32> to vector<8x8xbf16>
    %114 = vector.extract_strided_slice %40 {offsets = [16, 0], sizes = [8, 32], strides = [1, 1]} : vector<32x32xbf16> to vector<8x32xbf16>
    %cst_42 = arith.constant dense<0.000000e+00> : vector<8x32xf32>
    %115 = tpu.matmul %113, %114, %cst_42 {dimension_numbers = #tpu.dot_dimension_numbers<[1], [0], [0], [1], [0, 0, 1, 1], [], []>} : vector<8x8xbf16>, vector<8x32xbf16>, vector<8x32xf32> -> vector<8x32xf32>
    %116 = arith.addf %112, %115 : vector<8x32xf32>
    %c0_43 = arith.constant 0 : index
    %c0_44 = arith.constant 0 : index
    %117 = vector.load %arg8[%c0_43, %c0_44] : memref<8x32xf32, #tpu.memory_space<vmem>>, vector<8x32xf32>
    tpu.vector_store %arg8[%c0_43, %c0_44], %116 {strides = array<i32>} : memref<8x32xf32, #tpu.memory_space<vmem>>, vector<8x32xf32>,
    %118 = vector.extract_strided_slice %37 {offsets = [0, 24], sizes = [8, 8], strides = [1, 1]} : vector<8x32xbf16> to vector<8x8xbf16>
    %119 = vector.extract_strided_slice %38 {offsets = [0, 8], sizes = [8, 8], strides = [1, 1]} : vector<8x16xbf16> to vector<8x8xbf16>
    %120 = vector.extract_strided_slice %39 {offsets = [0, 8], sizes = [8, 8], strides = [1, 1]} : vector<8x16xbf16> to vector<8x8xbf16>
    %cst_45 = arith.constant dense<0.000000e+00> : vector<8x8xf32>
    %121 = tpu.matmul %118, %119, %cst_45 {dimension_numbers = #tpu.dot_dimension_numbers<[1], [1], [0], [0], [0, 0, 1, 0], [], []>} : vector<8x8xbf16>, vector<8x8xbf16>, vector<8x8xf32> -> vector<8x8xf32>
    %122 = arith.addf %121, %46 : vector<8x8xf32>
    %cst_46 = arith.constant dense<0xFF800000> : vector<8xf32>
    %123 = vector.multi_reduction <maximumf>, %122, %cst_46 [1] : vector<8x8xf32> to vector<8xf32>
    %124 = vector.shape_cast %123 : vector<8xf32> to vector<8x1xf32>
    %125 = vector.broadcast %124 : vector<8x1xf32> to vector<8x8xf32>
    %126 = arith.subf %122, %125 : vector<8x8xf32>
    %127 = math.exp %126 : vector<8x8xf32>
    %cst_47 = arith.constant dense<0.000000e+00> : vector<8xf32>
    %128 = vector.multi_reduction <add>, %127, %cst_47 [1] : vector<8x8xf32> to vector<8xf32>
    %129 = vector.shape_cast %128 : vector<8xf32> to vector<8x1xf32>
    %130 = arith.truncf %127 : vector<8x8xf32> to vector<8x8xbf16>
    %cst_48 = arith.constant dense<0.000000e+00> : vector<8x8xf32>
    %131 = tpu.matmul %130, %120, %cst_48 {dimension_numbers = #tpu.dot_dimension_numbers<[1], [0], [0], [1], [0, 0, 1, 1], [], []>} : vector<8x8xbf16>, vector<8x8xbf16>, vector<8x8xf32> -> vector<8x8xf32>
    %132 = tpu.reciprocal %129 {approx = true} : vector<8x1xf32> -> vector<8x1xf32>
    %133 = vector.broadcast %132 : vector<8x1xf32> to vector<8x8xf32>
    %134 = arith.mulf %131, %133 : vector<8x8xf32>
    %c0_49 = arith.constant 0 : index
    %c0_50 = arith.constant 0 : index
    %135 = vector.load %arg8[%c0_49, %c0_50] : memref<8x32xf32, #tpu.memory_space<vmem>>, vector<8x32xf32>
    %136 = arith.truncf %134 : vector<8x8xf32> to vector<8x8xbf16>
    %137 = vector.extract_strided_slice %40 {offsets = [24, 0], sizes = [8, 32], strides = [1, 1]} : vector<32x32xbf16> to vector<8x32xbf16>
    %cst_51 = arith.constant dense<0.000000e+00> : vector<8x32xf32>
    %138 = tpu.matmul %136, %137, %cst_51 {dimension_numbers = #tpu.dot_dimension_numbers<[1], [0], [0], [1], [0, 0, 1, 1], [], []>} : vector<8x8xbf16>, vector<8x32xbf16>, vector<8x32xf32> -> vector<8x32xf32>
    %139 = arith.addf %135, %138 : vector<8x32xf32>
    %c0_52 = arith.constant 0 : index
    %c0_53 = arith.constant 0 : index
    %140 = vector.load %arg8[%c0_52, %c0_53] : memref<8x32xf32, #tpu.memory_space<vmem>>, vector<8x32xf32>
    tpu.vector_store %arg8[%c0_52, %c0_53], %139 {strides = array<i32>} : memref<8x32xf32, #tpu.memory_space<vmem>>, vector<8x32xf32>,
    %c0_54 = arith.constant 0 : index
    %c0_55 = arith.constant 0 : index
    %141 = vector.load %arg8[%c0_54, %c0_55] : memref<8x32xf32, #tpu.memory_space<vmem>>, vector<8x32xf32>
    %c0_56 = arith.constant 0 : index
    %c0_57 = arith.constant 0 : index
    %c0_58 = arith.constant 0 : index
    %142 = vector.load %arg7[%c0_56, %c0_57, %c0_58] : memref<1x8x32xf32, #tpu.memory_space<vmem>>, vector<1x8x32xf32>
    %143 = vector.shape_cast %142 : vector<1x8x32xf32> to vector<8x32xf32>
    %144 = vector.shape_cast %141 : vector<8x32xf32> to vector<1x8x32xf32>
    tpu.vector_store %arg7[%c0_56, %c0_57, %c0_58], %144 {strides = array<i32>} : memref<1x8x32xf32, #tpu.memory_space<vmem>>, vector<1x8x32xf32>,
    return
  }
  func.func @transform_0(%arg0: i32) -> (i32, i32, i32) {
    %c0_i32 = arith.constant 0 : i32
    %c0_i32_0 = arith.constant 0 : i32
    %c0_i32_1 = arith.constant 0 : i32
    return %arg0, %c0_i32, %c0_i32_0 : i32, i32, i32
  }
  func.func @transform_1(%arg0: i32) -> (i32, i32) {
    %c0_i32 = arith.constant 0 : i32
    %c0_i32_0 = arith.constant 0 : i32
    %c0_i32_1 = arith.constant 0 : i32
    return %c0_i32, %c0_i32_0 : i32, i32
  }
  func.func @transform_2(%arg0: i32) -> (i32, i32) {
    %c0_i32 = arith.constant 0 : i32
    %c0_i32_0 = arith.constant 0 : i32
    %c0_i32_1 = arith.constant 0 : i32
    return %c0_i32, %c0_i32_0 : i32, i32
  }
  func.func @transform_3(%arg0: i32) -> (i32, i32) {
    %c0_i32 = arith.constant 0 : i32
    %c0_i32_0 = arith.constant 0 : i32
    %c0_i32_1 = arith.constant 0 : i32
    return %c0_i32, %c0_i32_0 : i32, i32
  }
  func.func @transform_4(%arg0: i32) -> (i32, i32) {
    %c0_i32 = arith.constant 0 : i32
    %c0_i32_0 = arith.constant 0 : i32
    %c0_i32_1 = arith.constant 0 : i32
    return %c0_i32, %c0_i32_0 : i32, i32
  }
  func.func @transform_5(%arg0: i32) -> (i32, i32) {
    %c0_i32 = arith.constant 0 : i32
    %c0_i32_0 = arith.constant 0 : i32
    %c0_i32_1 = arith.constant 0 : i32
    return %c0_i32, %c0_i32_0 : i32, i32
  }
  func.func @transform_6(%arg0: i32) -> (i32, i32, i32) {
    %c0_i32 = arith.constant 0 : i32
    %c0_i32_0 = arith.constant 0 : i32
    %c0_i32_1 = arith.constant 0 : i32
    return %arg0, %c0_i32, %c0_i32_0 : i32, i32, i32
  }
}

</mosaic_0001>

<llo_original>
// kernel: tpu_custom_call.1
$region0: #{tpu_custom_call.1}
  #allocation0 [shape = 'u32[]', space=smem, size = 0x4, offset = 0x4, fixed_abs, tag = 'smem constant byte address 0x4 - core index']
  #allocation1 [shape = 'u32[144,128]{1,0:T(1,128)}', space=vmem, size = 0x12000, scoped, tag = 'internal scratch']
  #allocation2 [shape = 'f32[8,32]{1,0:T(8,128)}', space=vmem, size = 0x1000, scoped, tag = 'scratch operand']
  %s0 = inlined_call_operand.hbm [shape: bf16[2,8,32], index: 0, kind: input, shape index: {}]
  %s1 = inlined_call_operand.hbm [shape: bf16[32,64], index: 1, kind: input, shape index: {}]
  %s2 = inlined_call_operand.hbm [shape: bf16[32,32], index: 2, kind: input, shape index: {}]
  %s3 = inlined_call_operand.vmem [shape: f32[8,32], index: 3, kind: input, shape index: {}]
  %s4 = inlined_call_operand.hbm [shape: f32[8,32], index: 4, kind: input, shape index: {}]
  %s5 = inlined_call_operand.vmem [shape: f32[8,32], index: 5, kind: input, shape index: {}]
  %s6 = inlined_call_operand.hbm [shape: f32[2,8,32], index: 6, kind: output, shape index: {}]
  %s7 = sld [smem:[#allocation0]]
  $region73: #{tpu_custom_call.1} parent=0
    _
  %s9 = ssub.s32 1, %s7
  %s10 = scalar_select 0, %s9, %s7
  $region1: #{tpu_custom_call.1} parent=0
    #allocation3 [shape = 'u8[4096]{0}', space=vmem, size = 0x1000, scoped, tag = 'input window, operand 0']
    #allocation4 [shape = 's32[2]{0}', space=sflag, size = 0x8, scoped, tag = 'scoped memory for tpu_custom_call.1']
    #allocation5 [shape = 's32[2]{0}', space=sflag, size = 0x8, scoped, tag = 'scoped memory for tpu_custom_call.1']
    #allocation6 [shape = 'u8[8192]{0}', space=vmem, size = 0x2000, scoped, tag = 'input window, operand 1, single buffered']
    #allocation7 [shape = 's32[1]{0}', space=sflag, size = 0x4, scoped, tag = 'scoped memory for tpu_custom_call.1']
    #allocation8 [shape = 'u8[8192]{0}', space=vmem, size = 0x2000, scoped, tag = 'input window, operand 2, single buffered']
    #allocation9 [shape = 'u8[4096]{0}', space=vmem, size = 0x1000, scoped, tag = 'input window, operand 4, single buffered']
    #allocation10 [shape = 's32[1]{0}', space=sflag, size = 0x4, scoped, tag = 'scoped memory for tpu_custom_call.1']
    #allocation11 [shape = 'u8[8192]{0}', space=vmem, size = 0x2000, scoped, tag = 'output window, operand 0']
    %11 = vsyncpa [#allocation4], 0
    %s12 = scalar_lea.sflag [#allocation4], 1
    %13 = vsyncpa %s12, 0
    %14 = vsyncpa [#allocation7], 0
    %15 = vsyncpa [#allocation10], 0
    %16 = vsyncpa [#allocation5], 0
    %s17 = scalar_lea.sflag [#allocation5], 1
    %18 = vsyncpa %s17, 0
    loop: start=0, step=1, limit=4
    $region2: #{tpu_custom_call.1} parent=1 // loop_pre_header
      _
    $region3: #{tpu_custom_call.1} parent=1 // loop_header
      %s20 = sphi 0, %s24
      %p21 = scmp.ge.s32.totalorder %s20, 4
      %s30 = sphi 0, %s32
      %s33 = sphi 0, %s30
      %s34 = sphi 0, %s33
      %s50 = sphi 0, %s34
      %s54 = sphi 0, %s54
      %s56 = sphi 0, %s54
      %s57 = sphi 0, %s56
      %s71 = sphi 0, %s57
      %s75 = sphi 0, %s75
      %s77 = sphi 0, %s75
      %s78 = sphi 0, %s77
      %s92 = sphi 0, %s78
      %s96 = sphi 0, %s96
      %s98 = sphi 0, %s96
      %s99 = sphi 0, %s98
      %s113 = sphi 0, %s99
      %s117 = sphi 0, %s117
      %s119 = sphi 0, %s117
      %s120 = sphi 0, %s119
      %s134 = sphi 0, %s120
      %s138 = sphi 0, %s138
      %s140 = sphi 0, %s138
      %s141 = sphi 0, %s140
      %s155 = sphi 0, %s141
      %s161 = sphi 0, %s163
      %s164 = sphi 0, %s161
      %s165 = sphi 0, %s164
      %s181 = sphi 0, %s165
    $region4: #{tpu_custom_call.1} parent=1 // loop_header_branch
      %23 = sbr.rel (%p21) target = $region8
    $region5: #{tpu_custom_call.1} parent=1 // loop_body
      %s25 = ssub.s32 %s20, 1
      %s26 = ssub.s32 %s20, 2
      %s27 = sadd.s32 %s20, 1
      %s28 = ssub.s32 %s20, %s27
      %p29 = scmp.eq.s32.totalorder %s28, 0
      %s31 = sadd.s32 %s30, 1
      %s32 = scalar_select %p29, %s30, %s31
      %p35 = pneg %p29
      %p36 = scmp.eq.s32.totalorder %s20, 1
      %p37 = por %p35, %p36
      %p38 = scmp.ne.s32.totalorder %s30, %s33
      %p39 = scmp.eq.s32.totalorder %s20, 0
      %p40 = por %p38, %p39
      %p41 = scmp.ne.s32.totalorder %s30, %s33
      %p42 = scmp.eq.s32.totalorder %s25, 1
      %p43 = por %p41, %p42
      %p44 = scmp.ne.s32.totalorder %s33, %s34
      %p45 = scmp.eq.s32.totalorder %s25, 0
      %p46 = por %p44, %p45
      %p47 = scmp.ne.s32.totalorder %s33, %s34
      %p48 = scmp.eq.s32.totalorder %s26, 1
      %p49 = por %p47, %p48
      %p51 = scmp.ne.s32.totalorder %s34, %s50
      %p52 = scmp.eq.s32.totalorder %s26, 0
      %p53 = por %p51, %p52
      %s55 = sadd.s32 %s54, 1
      %p58 = scmp.eq.s32.totalorder %s20, 1
      %p59 = scmp.ne.s32.totalorder %s54, %s56
      %p60 = scmp.eq.s32.totalorder %s20, 0
      %p61 = por %p59, %p60
      %p62 = scmp.ne.s32.totalorder %s54, %s56
      %p63 = scmp.eq.s32.totalorder %s25, 1
      %p64 = por %p62, %p63
      %p65 = scmp.ne.s32.totalorder %s56, %s57
      %p66 = scmp.eq.s32.totalorder %s25, 0
      %p67 = por %p65, %p66
      %p68 = scmp.ne.s32.totalorder %s56, %s57
      %p69 = scmp.eq.s32.totalorder %s26, 1
      %p70 = por %p68, %p69
      %p72 = scmp.ne.s32.totalorder %s57, %s71
      %p73 = scmp.eq.s32.totalorder %s26, 0
      %p74 = por %p72, %p73
      %s76 = sadd.s32 %s75, 1
      %p79 = scmp.eq.s32.totalorder %s20, 1
      %p80 = scmp.ne.s32.totalorder %s75, %s77
      %p81 = scmp.eq.s32.totalorder %s20, 0
      %p82 = por %p80, %p81
      %p83 = scmp.ne.s32.totalorder %s75, %s77
      %p84 = scmp.eq.s32.totalorder %s25, 1
      %p85 = por %p83, %p84
      %p86 = scmp.ne.s32.totalorder %s77, %s78
      %p87 = scmp.eq.s32.totalorder %s25, 0
      %p88 = por %p86, %p87
      %p89 = scmp.ne.s32.totalorder %s77, %s78
      %p90 = scmp.eq.s32.totalorder %s26, 1
      %p91 = por %p89, %p90
      %p93 = scmp.ne.s32.totalorder %s78, %s92
      %p94 = scmp.eq.s32.totalorder %s26, 0
      %p95 = por %p93, %p94
      %s97 = sadd.s32 %s96, 1
      %p100 = scmp.eq.s32.totalorder %s20, 1
      %p101 = scmp.ne.s32.totalorder %s96, %s98
      %p102 = scmp.eq.s32.totalorder %s20, 0
      %p103 = por %p101, %p102
      %p104 = scmp.ne.s32.totalorder %s96, %s98
      %p105 = scmp.eq.s32.totalorder %s25, 1
      %p106 = por %p104, %p105
      %p107 = scmp.ne.s32.totalorder %s98, %s99
      %p108 = scmp.eq.s32.totalorder %s25, 0
      %p109 = por %p107, %p108
      %p110 = scmp.ne.s32.totalorder %s98, %s99
      %p111 = scmp.eq.s32.totalorder %s26, 1
      %p112 = por %p110, %p111
      %p114 = scmp.ne.s32.totalorder %s99, %s113
      %p115 = scmp.eq.s32.totalorder %s26, 0
      %p116 = por %p114, %p115
      %s118 = sadd.s32 %s117, 1
      %p121 = scmp.eq.s32.totalorder %s20, 1
      %p122 = scmp.ne.s32.totalorder %s117, %s119
      %p123 = scmp.eq.s32.totalorder %s20, 0
      %p124 = por %p122, %p123
      %p125 = scmp.ne.s32.totalorder %s117, %s119
      %p126 = scmp.eq.s32.totalorder %s25, 1
      %p127 = por %p125, %p126
      %p128 = scmp.ne.s32.totalorder %s119, %s120
      %p129 = scmp.eq.s32.totalorder %s25, 0
      %p130 = por %p128, %p129
      %p131 = scmp.ne.s32.totalorder %s119, %s120
      %p132 = scmp.eq.s32.totalorder %s26, 1
      %p133 = por %p131, %p132
      %p135 = scmp.ne.s32.totalorder %s120, %s134
      %p136 = scmp.eq.s32.totalorder %s26, 0
      %p137 = por %p135, %p136
      %s139 = sadd.s32 %s138, 1
      %p142 = scmp.eq.s32.totalorder %s20, 1
      %p143 = scmp.ne.s32.totalorder %s138, %s140
      %p144 = scmp.eq.s32.totalorder %s20, 0
      %p145 = por %p143, %p144
      %p146 = scmp.ne.s32.totalorder %s138, %s140
      %p147 = scmp.eq.s32.totalorder %s25, 1
      %p148 = por %p146, %p147
      %p149 = scmp.ne.s32.totalorder %s140, %s141
      %p150 = scmp.eq.s32.totalorder %s25, 0
      %p151 = por %p149, %p150
      %p152 = scmp.ne.s32.totalorder %s140, %s141
      %p153 = scmp.eq.s32.totalorder %s26, 1
      %p154 = por %p152, %p153
      %p156 = scmp.ne.s32.totalorder %s141, %s155
      %p157 = scmp.eq.s32.totalorder %s26, 0
      %p158 = por %p156, %p157
      %s159 = ssub.s32 %s20, %s27
      %p160 = scmp.eq.s32.totalorder %s159, 0
      %s162 = sadd.s32 %s161, 1
      %s163 = scalar_select %p160, %s161, %s162
      %p166 = pneg %p160
      %p167 = scmp.eq.s32.totalorder %s20, 1
      %p168 = por %p166, %p167
      %p169 = scmp.ne.s32.totalorder %s161, %s164
      %p170 = scmp.eq.s32.totalorder %s20, 0
      %p171 = por %p169, %p170
      %p172 = scmp.ne.s32.totalorder %s161, %s164
      %p173 = scmp.eq.s32.totalorder %s25, 1
      %p174 = por %p172, %p173
      %p175 = scmp.ne.s32.totalorder %s164, %s165
      %p176 = scmp.eq.s32.totalorder %s25, 0
      %p177 = por %p175, %p176
      %p178 = scmp.ne.s32.totalorder %s164, %s165
      %p179 = scmp.eq.s32.totalorder %s26, 1
      %p180 = por %p178, %p179
      %p182 = scmp.ne.s32.totalorder %s165, %s181
      %p183 = scmp.eq.s32.totalorder %s26, 0
      %p184 = por %p182, %p183
      %p185 = scmp.le.s32.totalorder 1, %s20
      %p186 = scmp.lt.s32.totalorder %s20, 3
      %p187 = pnand %p185, %p186
      %p188 = pneg %p187
      // Predicated region
      $region9: #{tpu_custom_call.1} parent=5 // pred_check
        _
      $region10: #{tpu_custom_call.1} parent=5 // pred_check_branch
        %190 = sbr.rel (%p187) target = $region12
      $region11: #{tpu_custom_call.1} parent=5 // pred_region
        %s191 = ssub.s32 %s20, 1
        // Predicated region
        $region13: #{tpu_custom_call.1} parent=11 // pred_check
          %p192 = pneg %p67
        $region14: #{tpu_custom_call.1} parent=11 // pred_check_branch
          %194 = sbr.rel (%p192) target = $region16
        $region15: #{tpu_custom_call.1} parent=11 // pred_region
          %s196 = ssub.s32 256, 256
          %197 = vsyncadd [#allocation7], %s196
          %s198 = sshll.u32 [#allocation6], 4
          %s199 = int_to_ptr.vmem [resolvable:$true] %s198
          %204 = dma.hbm_to_vmem [thread:$0]  %s1, 256, %s199, [#allocation7], 64, 64, 4
        $region16: #{tpu_custom_call.1} parent=11 // pred_fallthru
          _
        // Predicated region
        $region17: #{tpu_custom_call.1} parent=11 // pred_check
          %p205 = pneg %p88
        $region18: #{tpu_custom_call.1} parent=11 // pred_check_branch
          %207 = sbr.rel (%p205) target = $region20
        $region19: #{tpu_custom_call.1} parent=11 // pred_region
          %s209 = ssub.s32 256, 256
          %210 = vsyncadd [#allocation7], %s209
          %s211 = sshll.u32 [#allocation8], 4
          %s212 = int_to_ptr.vmem [resolvable:$true] %s211
          %217 = dma.hbm_to_vmem [thread:$0]  %s2, 256, %s212, [#allocation7], 64, 64, 4
        $region20: #{tpu_custom_call.1} parent=11 // pred_fallthru
          _
        // Predicated region
        $region21: #{tpu_custom_call.1} parent=11 // pred_check
          %p218 = pneg %p109
        $region22: #{tpu_custom_call.1} parent=11 // pred_check_branch
          %220 = sbr.rel (%p218) target = $region24
        $region23: #{tpu_custom_call.1} parent=11 // pred_region
          _
        $region24: #{tpu_custom_call.1} parent=11 // pred_fallthru
          _
        // Predicated region
        $region25: #{tpu_custom_call.1} parent=11 // pred_check
          %p221 = pneg %p130
        $region26: #{tpu_custom_call.1} parent=11 // pred_check_branch
          %223 = sbr.rel (%p221) target = $region28
        $region27: #{tpu_custom_call.1} parent=11 // pred_region
          %s225 = ssub.s32 128, 128
          %226 = vsyncadd [#allocation10], %s225
          %s228 = sshll.u32 [#allocation9], 4
          %s229 = int_to_ptr.vmem [resolvable:$true] %s228
          %231 = dma.hbm_to_vmem [thread:$0]  %s4, 128, %s229, [#allocation10]
        $region28: #{tpu_custom_call.1} parent=11 // pred_fallthru
          _
        // Predicated region
        $region29: #{tpu_custom_call.1} parent=11 // pred_check
          %p232 = pneg %p151
        $region30: #{tpu_custom_call.1} parent=11 // pred_check_branch
          %234 = sbr.rel (%p232) target = $region32
        $region31: #{tpu_custom_call.1} parent=11 // pred_region
          _
        $region32: #{tpu_custom_call.1} parent=11 // pred_fallthru
          _
      $region12: #{tpu_custom_call.1} parent=5 // pred_fallthru
        _
      %p235 = scmp.lt.s32.totalorder %s20, 2
      // Predicated region
      $region33: #{tpu_custom_call.1} parent=5 // pred_check
        %p236 = pneg %p235
      $region34: #{tpu_custom_call.1} parent=5 // pred_check_branch
        %238 = sbr.rel (%p236) target = $region36
      $region35: #{tpu_custom_call.1} parent=5 // pred_region
        // Predicated region
        $region37: #{tpu_custom_call.1} parent=35 // pred_check
          %p239 = pneg %p40
        $region38: #{tpu_custom_call.1} parent=35 // pred_check_branch
          %241 = sbr.rel (%p239) target = $region40
        $region39: #{tpu_custom_call.1} parent=35 // pred_region
          %s242 = sand.u32 %s30, 1
          %s243 = scalar_lea.sflag [#allocation4], %s242
          %s244 = sand.u32 %s30, 1
          %s245 = smul.addr %s244, 4
          %s246 = scalar_lea.vmem [#allocation3], %s245
          %s248 = ssub.s32 64, 64
          %249 = vsyncadd %s243, %s248
          %s250 = smul.addr %s20, 64
          %s251 = scalar_lea.hbm %s0, %s250
          %s253 = sshll.u32 %s246, 4
          %s254 = int_to_ptr.vmem [resolvable:$true] %s253
          %256 = dma.hbm_to_vmem [thread:$0]  %s251, 64, %s254, %s243
        $region40: #{tpu_custom_call.1} parent=35 // pred_fallthru
          _
      $region36: #{tpu_custom_call.1} parent=5 // pred_fallthru
        _
      %p257 = scmp.le.s32.totalorder 1, %s20
      %p258 = scmp.lt.s32.totalorder %s20, 3
      %p259 = pnand %p257, %p258
      %p260 = pneg %p259
      // Predicated region
      $region41: #{tpu_custom_call.1} parent=5 // pred_check
        _
      $region42: #{tpu_custom_call.1} parent=5 // pred_check_branch
        %262 = sbr.rel (%p259) target = $region44
      $region43: #{tpu_custom_call.1} parent=5 // pred_region
        %s263 = ssub.s32 %s20, 1
        %s264 = sand.u32 %s33, 1
        %s265 = scalar_lea.sflag [#allocation4], %s264
        %s266 = sand.u32 %s33, 1
        %s267 = smul.addr %s266, 4
        %s268 = scalar_lea.vmem [#allocation3], %s267
        // Predicated region
        $region45: #{tpu_custom_call.1} parent=43 // pred_check
          %p269 = pneg %p46
        $region46: #{tpu_custom_call.1} parent=43 // pred_check_branch
          %271 = sbr.rel (%p269) target = $region48
        $region47: #{tpu_custom_call.1} parent=43 // pred_region
          %272 = dma.done %s265, 64
        $region48: #{tpu_custom_call.1} parent=43 // pred_fallthru
          _
        // Predicated region
        $region49: #{tpu_custom_call.1} parent=43 // pred_check
          %p273 = pneg %p67
        $region50: #{tpu_custom_call.1} parent=43 // pred_check_branch
          %275 = sbr.rel (%p273) target = $region52
        $region51: #{tpu_custom_call.1} parent=43 // pred_region
          %276 = dma.done [#allocation7], 256
        $region52: #{tpu_custom_call.1} parent=43 // pred_fallthru
          _
        // Predicated region
        $region53: #{tpu_custom_call.1} parent=43 // pred_check
          %p277 = pneg %p88
        $region54: #{tpu_custom_call.1} parent=43 // pred_check_branch
          %279 = sbr.rel (%p277) target = $region56
        $region55: #{tpu_custom_call.1} parent=43 // pred_region
          %280 = dma.done [#allocation7], 256
        $region56: #{tpu_custom_call.1} parent=43 // pred_fallthru
          _
        // Predicated region
        $region57: #{tpu_custom_call.1} parent=43 // pred_check
          %p281 = pneg %p130
        $region58: #{tpu_custom_call.1} parent=43 // pred_check_branch
          %283 = sbr.rel (%p281) target = $region60
        $region59: #{tpu_custom_call.1} parent=43 // pred_region
          %284 = dma.done [#allocation10], 128
        $region60: #{tpu_custom_call.1} parent=43 // pred_fallthru
          _
        %s285 = sand.u32 %s33, 1
        %s286 = scalar_lea.sflag [#allocation4], %s285
        %s287 = sand.u32 %s33, 1
        %s288 = smul.addr %s287, 4
        %s289 = scalar_lea.vmem [#allocation3], %s288
        %p290 = pneg %p46
        %p291 = pneg %p43
        %p292 = pneg %p67
        %p293 = pneg %p64
        %p294 = pneg %p88
        %p295 = pneg %p85
        %p296 = pneg %p109
        %p297 = pneg %p106
        %p298 = pneg %p130
        %p299 = pneg %p127
        %p300 = pneg %p151
        %p301 = pneg %p148
        %p302 = pneg %p177
        %p303 = pneg %p174
        %s304 = sand.u32 %s164, 1
        %s305 = scalar_lea.sflag [#allocation5], %s304
        %s306 = sand.u32 %s164, 1
        %s307 = smul.addr %s306, 8
        %s308 = scalar_lea.vmem [#allocation11], %s307
        %v310 = vld [vmem:[%s268] sm:$0xf]
        %v311 = vld [vmem:[#allocation6] sm:$0xf]
        %v312 = vld [vmem:[#allocation6 + $0x4] sm:$0xf]
        %v313 = vld [vmem:[#allocation6 + $0x8] sm:$0xf]
        %v314 = vld [vmem:[#allocation6 + $0xc] sm:$0xf]
        %v319 = vunpack.c.l.b16 %v311
        %v320 = vunpack.c.l.b16 %v312
        %v321 = vunpack.c.l.b16 %v313
        %v322 = vunpack.c.l.b16 %v314
        %v323 = vpack.c.b16 %v320, %v319
        %v324 = vpack.c.b16 %v322, %v321
        %vm327 = vcmask 261120
        %v329 = vsel %vm327, %v310, 0
        %331 = vmatprep.subr.bf16.mxu0 0
        %332 = vmatpush1.bf16.msra.mxu0 %v323
        %333 = vmatprep.subr.bf16.mxu0 0
        %334 = vmatpush1.bf16.msra.mxu0 %v324
        %335 = vmatprep.subr.bf16.mxu0 0
        %336 = vmatpush1.bf16.msra.mxu0 0
        %337 = vmatprep.subr.bf16.mxu0 0
        %338 = vmatpush1.bf16.msra.mxu0 0
        %339 = vmatprep.subr.bf16.mxu0 0
        %340 = vmatpush1.bf16.msra.mxu0 0
        %341 = vmatprep.subr.bf16.mxu0 0
        %342 = vmatpush1.bf16.msra.mxu0 0
        %343 = vmatprep.subr.bf16.mxu0 0
        %344 = vmatpush1.bf16.msra.mxu0 0
        %345 = vmatprep.subr.bf16.mxu0 0
        %346 = vmatpush1.bf16.msra.mxu0 0
        %347 = vmatprep.subr.bf16.mxu0 0
        %348 = vmatpush1.bf16.msra.mxu0 0
        %349 = vmatprep.subr.bf16.mxu0 0
        %350 = vmatpush1.bf16.msra.mxu0 0
        %351 = vmatprep.subr.bf16.mxu0 0
        %352 = vmatpush1.bf16.msra.mxu0 0
        %353 = vmatprep.subr.bf16.mxu0 0
        %354 = vmatpush1.bf16.msra.mxu0 0
        %355 = vmatprep.subr.bf16.mxu0 0
        %356 = vmatpush1.bf16.msra.mxu0 0
        %357 = vmatprep.subr.bf16.mxu0 0
        %358 = vmatpush1.bf16.msra.mxu0 0
        %359 = vmatprep.subr.bf16.mxu0 0
        %360 = vmatpush1.bf16.msra.mxu0 0
        %361 = vmatprep.subr.bf16.mxu0 0
        %362 = vmatpush1.bf16.msra.mxu0 0
        %363 = vmatprep.mubr.bf16.mxu0 0
        %364 = vmatmul.mubr.bf16.gmra.mrb[0].mxu0 %v329
        %v365 = vpop.f32.mrb[0].mxu0
        %v366 = vadd.f32 0.0, %v365
        %v367 = vpop.f32.mrb[0].mxu0
        %v368 = vpop.f32.mrb[0].mxu0
        %v369 = vpop.f32.mrb[0].mxu0
        %370 = vdwg.mxu0
        %v371 = vld [vmem:[%s3] sm:$0xff]
        %v372 = vld [vmem:[#allocation9] sm:$0xff]
        %v373 = vld [vmem:[%s5] sm:$0xff]
        %v374 = vmul.f32 %v366, %v371
        %376 = vrot.lane.b32.xlu0 %v366, 124
        %v377 = vpop.permute.xlu0 %376
        %379 = vrot.lane.b32.xlu0 %v366, 28
        %v380 = vpop.permute.xlu0 %379
        %vm382 = vcmask 228352
        %v383 = vsel %vm382, %v377, %v380
        %v384 = vmul.f32 %v383, %v372
        %v385 = vadd.f32 %v374, %v384
        %386 = vrot.lane.b32.xlu0 %v366, 100
        %v387 = vpop.permute.xlu0 %386
        %389 = vrot.lane.b32.xlu0 %v366, 4
        %v390 = vpop.permute.xlu0 %389
        %vm392 = vcmask 31744
        %v393 = vsel %vm392, %v387, %v390
        %v394 = vmul.f32 %v393, %v373
        %v395 = vadd.f32 %v385, %v394
        %v396 = vmul.f32 %v395, 0.35355338
        %398 = vrot.lane.b32.xlu0 %v371, 32
        %v399 = vpop.permute.xlu0 %398
        %v401 = vmul.f32 %v366, %v399
        %402 = vrot.lane.b32.xlu0 %v366, 92
        %v403 = vpop.permute.xlu0 %402
        %405 = vrot.lane.b32.xlu0 %v366, 108
        %v406 = vpop.permute.xlu0 %405
        %vm408 = vcmask 97280
        %v409 = vsel %vm408, %v403, %v406
        %v410 = vmul.f32 %v409, %v372
        %412 = vrot.lane.b32.xlu0 %v410, 32
        %v413 = vpop.permute.xlu0 %412
        %v415 = vadd.f32 %v401, %v413
        %416 = vrot.lane.b32.xlu0 %v366, 84
        %v417 = vpop.permute.xlu0 %416
        %v419 = vsel %vm392, %v417, %v387
        %v420 = vmul.f32 %v419, %v373
        %422 = vrot.lane.b32.xlu0 %v420, 32
        %v423 = vpop.permute.xlu0 %422
        %v425 = vadd.f32 %v415, %v423
        %v426 = vpack.c.bf16 %v396, %v396
        %v427 = vpack.c.bf16 %v425, %v425
        %v428 = vpack.c.bf16 %v366, %v366
        %v429 = vld [vmem:[#allocation8] sm:$0xf]
        %v430 = vld [vmem:[#allocation8 + $0x4] sm:$0xf]
        %v431 = vld [vmem:[#allocation8 + $0x8] sm:$0xf]
        %v432 = vld [vmem:[#allocation8 + $0xc] sm:$0xf]
        %v433 = vlaneseq
        %v434 = vshrl.u32 %v433, 7
        %v435 = vlaneseq
        %v436 = vand.u32 %v435, 127
        %vm437 = vcmp.le.s32.totalorder %v436, %v434
        %v438 = vsel %vm437, 0.0, -1e+30
        %439 = vst.msk [vmem:[#allocation2] sm:$0xff] %vm327, 0.0
        %441 = vrot.lane.b32.xlu0 %v427, 96
        %v442 = vpop.permute.xlu0 %441
        %vm443 = vcmask 64512
        %v445 = vsel %vm443, %v426, 0
        %v448 = vsel %vm443, %v442, 0
        %450 = vmatprep.subr.bf16.mxu0 0
        %451 = vmatpush1.bf16.xpose.msra.mxu0 %v448
        %452 = vmatprep.subr.bf16.mxu0 0
        %453 = vmatpush1.bf16.xpose.msra.mxu0 0
        %454 = vmatprep.subr.bf16.mxu0 0
        %455 = vmatpush1.bf16.xpose.msra.mxu0 0
        %456 = vmatprep.subr.bf16.mxu0 0
        %457 = vmatpush1.bf16.xpose.msra.mxu0 0
        %458 = vmatprep.subr.bf16.mxu0 0
        %459 = vmatpush1.bf16.xpose.msra.mxu0 0
        %460 = vmatprep.subr.bf16.mxu0 0
        %461 = vmatpush1.bf16.xpose.msra.mxu0 0
        %462 = vmatprep.subr.bf16.mxu0 0
        %463 = vmatpush1.bf16.xpose.msra.mxu0 0
        %464 = vmatprep.subr.bf16.mxu0 0
        %465 = vmatpush1.bf16.xpose.msra.mxu0 0
        %466 = vmatprep.subr.bf16.mxu0 0
        %467 = vmatpush1.bf16.xpose.msra.mxu0 0
        %468 = vmatprep.subr.bf16.mxu0 0
        %469 = vmatpush1.bf16.xpose.msra.mxu0 0
        %470 = vmatprep.subr.bf16.mxu0 0
        %471 = vmatpush1.bf16.xpose.msra.mxu0 0
        %472 = vmatprep.subr.bf16.mxu0 0
        %473 = vmatpush1.bf16.xpose.msra.mxu0 0
        %474 = vmatprep.subr.bf16.mxu0 0
        %475 = vmatpush1.bf16.xpose.msra.mxu0 0
        %476 = vmatprep.subr.bf16.mxu0 0
        %477 = vmatpush1.bf16.xpose.msra.mxu0 0
        %478 = vmatprep.subr.bf16.mxu0 0
        %479 = vmatpush1.bf16.xpose.msra.mxu0 0
        %480 = vmatprep.subr.bf16.mxu0 0
        %481 = vmatpush1.bf16.xpose.msra.mxu0 0
        %482 = vmatprep.mubr.bf16.mxu0 0
        %483 = vmatmul.mubr.bf16.gmra.mrb[0].mxu0 %v445
        %v484 = vpop.f32.mrb[0].mxu0
        %v485 = vadd.f32 %v438, %v484
        %v486 = vpop.f32.mrb[0].mxu0
        %v487 = vpop.f32.mrb[0].mxu0
        %v488 = vpop.f32.mrb[0].mxu0
        %489 = vdwg.mxu0
        %v490 = vsel %vm443, %v485, -inf
        %491 = vmax.xlane.f32.xlu0 %v490
        %v492 = vpop.xlane.xlu0 %491
        %v493 = vsub.f32 %v485, %v492
        %v494 = vmul.f32 %v493, 1.442695
        %v495 = vpow.pop %v494
        %v496 = vsel %vm443, %v495, 0.0
        %497 = vadd.xlane.f32.xlu0 %v496
        %v498 = vpop.xlane.xlu0 %497
        %v499 = vpack.c.bf16 %v495, %v495
        %501 = vrot.lane.b32.xlu0 %v428, 80
        %v502 = vpop.permute.xlu0 %501
        %v504 = vsel %vm443, %v499, 0
        %vm506 = vcmask 1043456
        %v508 = vsel %vm506, %v502, 0
        %510 = vmatprep.subr.bf16.mxu0 0
        %511 = vmatpush1.bf16.msra.mxu0 %v508
        %512 = vmatprep.subr.bf16.mxu0 0
        %513 = vmatpush1.bf16.msra.mxu0 0
        %514 = vmatprep.subr.bf16.mxu0 0
        %515 = vmatpush1.bf16.msra.mxu0 0
        %516 = vmatprep.subr.bf16.mxu0 0
        %517 = vmatpush1.bf16.msra.mxu0 0
        %518 = vmatprep.subr.bf16.mxu0 0
        %519 = vmatpush1.bf16.msra.mxu0 0
        %520 = vmatprep.subr.bf16.mxu0 0
        %521 = vmatpush1.bf16.msra.mxu0 0
        %522 = vmatprep.subr.bf16.mxu0 0
        %523 = vmatpush1.bf16.msra.mxu0 0
        %524 = vmatprep.subr.bf16.mxu0 0
        %525 = vmatpush1.bf16.msra.mxu0 0
        %526 = vmatprep.subr.bf16.mxu0 0
        %527 = vmatpush1.bf16.msra.mxu0 0
        %528 = vmatprep.subr.bf16.mxu0 0
        %529 = vmatpush1.bf16.msra.mxu0 0
        %530 = vmatprep.subr.bf16.mxu0 0
        %531 = vmatpush1.bf16.msra.mxu0 0
        %532 = vmatprep.subr.bf16.mxu0 0
        %533 = vmatpush1.bf16.msra.mxu0 0
        %534 = vmatprep.subr.bf16.mxu0 0
        %535 = vmatpush1.bf16.msra.mxu0 0
        %536 = vmatprep.subr.bf16.mxu0 0
        %537 = vmatpush1.bf16.msra.mxu0 0
        %538 = vmatprep.subr.bf16.mxu0 0
        %539 = vmatpush1.bf16.msra.mxu0 0
        %540 = vmatprep.subr.bf16.mxu0 0
        %541 = vmatpush1.bf16.msra.mxu0 0
        %542 = vmatprep.mubr.bf16.mxu0 0
        %543 = vmatmul.mubr.bf16.gmra.mrb[0].mxu0 %v504
        %v544 = vpop.f32.mrb[0].mxu0
        %v545 = vadd.f32 0.0, %v544
        %v546 = vpop.f32.mrb[0].mxu0
        %v547 = vpop.f32.mrb[0].mxu0
        %v548 = vpop.f32.mrb[0].mxu0
        %549 = vdwg.mxu0
        %v550 = vrcp.pop %v498
        %v551 = vmul.f32 %v545, %v550
        %v552 = vld [vmem:[#allocation2] sm:$0xff]
        %v553 = vpack.c.bf16 %v551, %v551
        %v555 = vsel %vm443, %v553, 0
        %v558 = vsel %vm506, %v429, 0
        %560 = vmatprep.subr.bf16.mxu0 0
        %561 = vmatpush1.bf16.msra.mxu0 %v558
        %562 = vmatprep.subr.bf16.mxu0 0
        %563 = vmatpush1.bf16.msra.mxu0 0
        %564 = vmatprep.subr.bf16.mxu0 0
        %565 = vmatpush1.bf16.msra.mxu0 0
        %566 = vmatprep.subr.bf16.mxu0 0
        %567 = vmatpush1.bf16.msra.mxu0 0
        %568 = vmatprep.subr.bf16.mxu0 0
        %569 = vmatpush1.bf16.msra.mxu0 0
        %570 = vmatprep.subr.bf16.mxu0 0
        %571 = vmatpush1.bf16.msra.mxu0 0
        %572 = vmatprep.subr.bf16.mxu0 0
        %573 = vmatpush1.bf16.msra.mxu0 0
        %574 = vmatprep.subr.bf16.mxu0 0
        %575 = vmatpush1.bf16.msra.mxu0 0
        %576 = vmatprep.subr.bf16.mxu0 0
        %577 = vmatpush1.bf16.msra.mxu0 0
        %578 = vmatprep.subr.bf16.mxu0 0
        %579 = vmatpush1.bf16.msra.mxu0 0
        %580 = vmatprep.subr.bf16.mxu0 0
        %581 = vmatpush1.bf16.msra.mxu0 0
        %582 = vmatprep.subr.bf16.mxu0 0
        %583 = vmatpush1.bf16.msra.mxu0 0
        %584 = vmatprep.subr.bf16.mxu0 0
        %585 = vmatpush1.bf16.msra.mxu0 0
        %586 = vmatprep.subr.bf16.mxu0 0
        %587 = vmatpush1.bf16.msra.mxu0 0
        %588 = vmatprep.subr.bf16.mxu0 0
        %589 = vmatpush1.bf16.msra.mxu0 0
        %590 = vmatprep.subr.bf16.mxu0 0
        %591 = vmatpush1.bf16.msra.mxu0 0
        %592 = vmatprep.mubr.bf16.mxu0 0
        %593 = vmatmul.mubr.bf16.gmra.mrb[0].mxu0 %v555
        %v594 = vpop.f32.mrb[0].mxu0
        %v595 = vadd.f32 0.0, %v594
        %v596 = vpop.f32.mrb[0].mxu0
        %v597 = vpop.f32.mrb[0].mxu0
        %v598 = vpop.f32.mrb[0].mxu0
        %599 = vdwg.mxu0
        %v600 = vadd.f32 %v552, %v595
        %601 = vst.msk [vmem:[#allocation2] sm:$0xff] %vm327, %v600
        %603 = vrot.lane.b32.xlu0 %v426, 120
        %v604 = vpop.permute.xlu0 %603
        %v606 = vsel %vm443, %v604, 0
        %608 = vmatprep.subr.bf16.mxu0 0
        %609 = vmatpush1.bf16.xpose.msra.mxu0 %v448
        %610 = vmatprep.subr.bf16.mxu0 0
        %611 = vmatpush1.bf16.xpose.msra.mxu0 0
        %612 = vmatprep.subr.bf16.mxu0 0
        %613 = vmatpush1.bf16.xpose.msra.mxu0 0
        %614 = vmatprep.subr.bf16.mxu0 0
        %615 = vmatpush1.bf16.xpose.msra.mxu0 0
        %616 = vmatprep.subr.bf16.mxu0 0
        %617 = vmatpush1.bf16.xpose.msra.mxu0 0
        %618 = vmatprep.subr.bf16.mxu0 0
        %619 = vmatpush1.bf16.xpose.msra.mxu0 0
        %620 = vmatprep.subr.bf16.mxu0 0
        %621 = vmatpush1.bf16.xpose.msra.mxu0 0
        %622 = vmatprep.subr.bf16.mxu0 0
        %623 = vmatpush1.bf16.xpose.msra.mxu0 0
        %624 = vmatprep.subr.bf16.mxu0 0
        %625 = vmatpush1.bf16.xpose.msra.mxu0 0
        %626 = vmatprep.subr.bf16.mxu0 0
        %627 = vmatpush1.bf16.xpose.msra.mxu0 0
        %628 = vmatprep.subr.bf16.mxu0 0
        %629 = vmatpush1.bf16.xpose.msra.mxu0 0
        %630 = vmatprep.subr.bf16.mxu0 0
        %631 = vmatpush1.bf16.xpose.msra.mxu0 0
        %632 = vmatprep.subr.bf16.mxu0 0
        %633 = vmatpush1.bf16.xpose.msra.mxu0 0
        %634 = vmatprep.subr.bf16.mxu0 0
        %635 = vmatpush1.bf16.xpose.msra.mxu0 0
        %636 = vmatprep.subr.bf16.mxu0 0
        %637 = vmatpush1.bf16.xpose.msra.mxu0 0
        %638 = vmatprep.subr.bf16.mxu0 0
        %639 = vmatpush1.bf16.xpose.msra.mxu0 0
        %640 = vmatprep.mubr.bf16.mxu0 0
        %641 = vmatmul.mubr.bf16.gmra.mrb[0].mxu0 %v606
        %v642 = vpop.f32.mrb[0].mxu0
        %v643 = vadd.f32 %v438, %v642
        %v644 = vpop.f32.mrb[0].mxu0
        %v645 = vpop.f32.mrb[0].mxu0
        %v646 = vpop.f32.mrb[0].mxu0
        %647 = vdwg.mxu0
        %v648 = vsel %vm443, %v643, -inf
        %649 = vmax.xlane.f32.xlu0 %v648
        %v650 = vpop.xlane.xlu0 %649
        %v651 = vsub.f32 %v643, %v650
        %v652 = vmul.f32 %v651, 1.442695
        %v653 = vpow.pop %v652
        %v654 = vsel %vm443, %v653, 0.0
        %655 = vadd.xlane.f32.xlu0 %v654
        %v656 = vpop.xlane.xlu0 %655
        %v657 = vpack.c.bf16 %v653, %v653
        %v659 = vsel %vm443, %v657, 0
        %661 = vmatprep.subr.bf16.mxu0 0
        %662 = vmatpush1.bf16.msra.mxu0 %v508
        %663 = vmatprep.subr.bf16.mxu0 0
        %664 = vmatpush1.bf16.msra.mxu0 0
        %665 = vmatprep.subr.bf16.mxu0 0
        %666 = vmatpush1.bf16.msra.mxu0 0
        %667 = vmatprep.subr.bf16.mxu0 0
        %668 = vmatpush1.bf16.msra.mxu0 0
        %669 = vmatprep.subr.bf16.mxu0 0
        %670 = vmatpush1.bf16.msra.mxu0 0
        %671 = vmatprep.subr.bf16.mxu0 0
        %672 = vmatpush1.bf16.msra.mxu0 0
        %673 = vmatprep.subr.bf16.mxu0 0
        %674 = vmatpush1.bf16.msra.mxu0 0
        %675 = vmatprep.subr.bf16.mxu0 0
        %676 = vmatpush1.bf16.msra.mxu0 0
        %677 = vmatprep.subr.bf16.mxu0 0
        %678 = vmatpush1.bf16.msra.mxu0 0
        %679 = vmatprep.subr.bf16.mxu0 0
        %680 = vmatpush1.bf16.msra.mxu0 0
        %681 = vmatprep.subr.bf16.mxu0 0
        %682 = vmatpush1.bf16.msra.mxu0 0
        %683 = vmatprep.subr.bf16.mxu0 0
        %684 = vmatpush1.bf16.msra.mxu0 0
        %685 = vmatprep.subr.bf16.mxu0 0
        %686 = vmatpush1.bf16.msra.mxu0 0
        %687 = vmatprep.subr.bf16.mxu0 0
        %688 = vmatpush1.bf16.msra.mxu0 0
        %689 = vmatprep.subr.bf16.mxu0 0
        %690 = vmatpush1.bf16.msra.mxu0 0
        %691 = vmatprep.subr.bf16.mxu0 0
        %692 = vmatpush1.bf16.msra.mxu0 0
        %693 = vmatprep.mubr.bf16.mxu0 0
        %694 = vmatmul.mubr.bf16.gmra.mrb[0].mxu0 %v659
        %v695 = vpop.f32.mrb[0].mxu0
        %v696 = vadd.f32 0.0, %v695
        %v697 = vpop.f32.mrb[0].mxu0
        %v698 = vpop.f32.mrb[0].mxu0
        %v699 = vpop.f32.mrb[0].mxu0
        %700 = vdwg.mxu0
        %v701 = vrcp.pop %v656
        %v702 = vmul.f32 %v696, %v701
        %v703 = vld [vmem:[#allocation2] sm:$0xff]
        %v704 = vpack.c.bf16 %v702, %v702
        %v706 = vsel %vm443, %v704, 0
        %v709 = vsel %vm506, %v430, 0
        %711 = vmatprep.subr.bf16.mxu0 0
        %712 = vmatpush1.bf16.msra.mxu0 %v709
        %713 = vmatprep.subr.bf16.mxu0 0
        %714 = vmatpush1.bf16.msra.mxu0 0
        %715 = vmatprep.subr.bf16.mxu0 0
        %716 = vmatpush1.bf16.msra.mxu0 0
        %717 = vmatprep.subr.bf16.mxu0 0
        %718 = vmatpush1.bf16.msra.mxu0 0
        %719 = vmatprep.subr.bf16.mxu0 0
        %720 = vmatpush1.bf16.msra.mxu0 0
        %721 = vmatprep.subr.bf16.mxu0 0
        %722 = vmatpush1.bf16.msra.mxu0 0
        %723 = vmatprep.subr.bf16.mxu0 0
        %724 = vmatpush1.bf16.msra.mxu0 0
        %725 = vmatprep.subr.bf16.mxu0 0
        %726 = vmatpush1.bf16.msra.mxu0 0
        %727 = vmatprep.subr.bf16.mxu0 0
        %728 = vmatpush1.bf16.msra.mxu0 0
        %729 = vmatprep.subr.bf16.mxu0 0
        %730 = vmatpush1.bf16.msra.mxu0 0
        %731 = vmatprep.subr.bf16.mxu0 0
        %732 = vmatpush1.bf16.msra.mxu0 0
        %733 = vmatprep.subr.bf16.mxu0 0
        %734 = vmatpush1.bf16.msra.mxu0 0
        %735 = vmatprep.subr.bf16.mxu0 0
        %736 = vmatpush1.bf16.msra.mxu0 0
        %737 = vmatprep.subr.bf16.mxu0 0
        %738 = vmatpush1.bf16.msra.mxu0 0
        %739 = vmatprep.subr.bf16.mxu0 0
        %740 = vmatpush1.bf16.msra.mxu0 0
        %741 = vmatprep.subr.bf16.mxu0 0
        %742 = vmatpush1.bf16.msra.mxu0 0
        %743 = vmatprep.mubr.bf16.mxu0 0
        %744 = vmatmul.mubr.bf16.gmra.mrb[0].mxu0 %v706
        %v745 = vpop.f32.mrb[0].mxu0
        %v746 = vadd.f32 0.0, %v745
        %v747 = vpop.f32.mrb[0].mxu0
        %v748 = vpop.f32.mrb[0].mxu0
        %v749 = vpop.f32.mrb[0].mxu0
        %750 = vdwg.mxu0
        %v751 = vadd.f32 %v703, %v746
        %752 = vst.msk [vmem:[#allocation2] sm:$0xff] %vm327, %v751
        %753 = vrot.lane.b32.xlu0 %v426, 112
        %v754 = vpop.permute.xlu0 %753
        %755 = vrot.lane.b32.xlu0 %v427, 88
        %v756 = vpop.permute.xlu0 %755
        %v758 = vsel %vm443, %v754, 0
        %v761 = vsel %vm443, %v756, 0
        %763 = vmatprep.subr.bf16.mxu0 0
        %764 = vmatpush1.bf16.xpose.msra.mxu0 %v761
        %765 = vmatprep.subr.bf16.mxu0 0
        %766 = vmatpush1.bf16.xpose.msra.mxu0 0
        %767 = vmatprep.subr.bf16.mxu0 0
        %768 = vmatpush1.bf16.xpose.msra.mxu0 0
        %769 = vmatprep.subr.bf16.mxu0 0
        %770 = vmatpush1.bf16.xpose.msra.mxu0 0
        %771 = vmatprep.subr.bf16.mxu0 0
        %772 = vmatpush1.bf16.xpose.msra.mxu0 0
        %773 = vmatprep.subr.bf16.mxu0 0
        %774 = vmatpush1.bf16.xpose.msra.mxu0 0
        %775 = vmatprep.subr.bf16.mxu0 0
        %776 = vmatpush1.bf16.xpose.msra.mxu0 0
        %777 = vmatprep.subr.bf16.mxu0 0
        %778 = vmatpush1.bf16.xpose.msra.mxu0 0
        %779 = vmatprep.subr.bf16.mxu0 0
        %780 = vmatpush1.bf16.xpose.msra.mxu0 0
        %781 = vmatprep.subr.bf16.mxu0 0
        %782 = vmatpush1.bf16.xpose.msra.mxu0 0
        %783 = vmatprep.subr.bf16.mxu0 0
        %784 = vmatpush1.bf16.xpose.msra.mxu0 0
        %785 = vmatprep.subr.bf16.mxu0 0
        %786 = vmatpush1.bf16.xpose.msra.mxu0 0
        %787 = vmatprep.subr.bf16.mxu0 0
        %788 = vmatpush1.bf16.xpose.msra.mxu0 0
        %789 = vmatprep.subr.bf16.mxu0 0
        %790 = vmatpush1.bf16.xpose.msra.mxu0 0
        %791 = vmatprep.subr.bf16.mxu0 0
        %792 = vmatpush1.bf16.xpose.msra.mxu0 0
        %793 = vmatprep.subr.bf16.mxu0 0
        %794 = vmatpush1.bf16.xpose.msra.mxu0 0
        %795 = vmatprep.mubr.bf16.mxu0 0
        %796 = vmatmul.mubr.bf16.gmra.mrb[0].mxu0 %v758
        %v797 = vpop.f32.mrb[0].mxu0
        %v798 = vadd.f32 %v438, %v797
        %v799 = vpop.f32.mrb[0].mxu0
        %v800 = vpop.f32.mrb[0].mxu0
        %v801 = vpop.f32.mrb[0].mxu0
        %802 = vdwg.mxu0
        %v803 = vsel %vm443, %v798, -inf
        %804 = vmax.xlane.f32.xlu0 %v803
        %v805 = vpop.xlane.xlu0 %804
        %v806 = vsub.f32 %v798, %v805
        %v807 = vmul.f32 %v806, 1.442695
        %v808 = vpow.pop %v807
        %v809 = vsel %vm443, %v808, 0.0
        %810 = vadd.xlane.f32.xlu0 %v809
        %v811 = vpop.xlane.xlu0 %810
        %v812 = vpack.c.bf16 %v808, %v808
        %813 = vrot.lane.b32.xlu0 %v428, 72
        %v814 = vpop.permute.xlu0 %813
        %v816 = vsel %vm443, %v812, 0
        %v819 = vsel %vm506, %v814, 0
        %821 = vmatprep.subr.bf16.mxu0 0
        %822 = vmatpush1.bf16.msra.mxu0 %v819
        %823 = vmatprep.subr.bf16.mxu0 0
        %824 = vmatpush1.bf16.msra.mxu0 0
        %825 = vmatprep.subr.bf16.mxu0 0
        %826 = vmatpush1.bf16.msra.mxu0 0
        %827 = vmatprep.subr.bf16.mxu0 0
        %828 = vmatpush1.bf16.msra.mxu0 0
        %829 = vmatprep.subr.bf16.mxu0 0
        %830 = vmatpush1.bf16.msra.mxu0 0
        %831 = vmatprep.subr.bf16.mxu0 0
        %832 = vmatpush1.bf16.msra.mxu0 0
        %833 = vmatprep.subr.bf16.mxu0 0
        %834 = vmatpush1.bf16.msra.mxu0 0
        %835 = vmatprep.subr.bf16.mxu0 0
        %836 = vmatpush1.bf16.msra.mxu0 0
        %837 = vmatprep.subr.bf16.mxu0 0
        %838 = vmatpush1.bf16.msra.mxu0 0
        %839 = vmatprep.subr.bf16.mxu0 0
        %840 = vmatpush1.bf16.msra.mxu0 0
        %841 = vmatprep.subr.bf16.mxu0 0
        %842 = vmatpush1.bf16.msra.mxu0 0
        %843 = vmatprep.subr.bf16.mxu0 0
        %844 = vmatpush1.bf16.msra.mxu0 0
        %845 = vmatprep.subr.bf16.mxu0 0
        %846 = vmatpush1.bf16.msra.mxu0 0
        %847 = vmatprep.subr.bf16.mxu0 0
        %848 = vmatpush1.bf16.msra.mxu0 0
        %849 = vmatprep.subr.bf16.mxu0 0
        %850 = vmatpush1.bf16.msra.mxu0 0
        %851 = vmatprep.subr.bf16.mxu0 0
        %852 = vmatpush1.bf16.msra.mxu0 0
        %853 = vmatprep.mubr.bf16.mxu0 0
        %854 = vmatmul.mubr.bf16.gmra.mrb[0].mxu0 %v816
        %v855 = vpop.f32.mrb[0].mxu0
        %v856 = vadd.f32 0.0, %v855
        %v857 = vpop.f32.mrb[0].mxu0
        %v858 = vpop.f32.mrb[0].mxu0
        %v859 = vpop.f32.mrb[0].mxu0
        %860 = vdwg.mxu0
        %v861 = vrcp.pop %v811
        %v862 = vmul.f32 %v856, %v861
        %v863 = vld [vmem:[#allocation2] sm:$0xff]
        %v864 = vpack.c.bf16 %v862, %v862
        %v866 = vsel %vm443, %v864, 0
        %v869 = vsel %vm506, %v431, 0
        %871 = vmatprep.subr.bf16.mxu0 0
        %872 = vmatpush1.bf16.msra.mxu0 %v869
        %873 = vmatprep.subr.bf16.mxu0 0
        %874 = vmatpush1.bf16.msra.mxu0 0
        %875 = vmatprep.subr.bf16.mxu0 0
        %876 = vmatpush1.bf16.msra.mxu0 0
        %877 = vmatprep.subr.bf16.mxu0 0
        %878 = vmatpush1.bf16.msra.mxu0 0
        %879 = vmatprep.subr.bf16.mxu0 0
        %880 = vmatpush1.bf16.msra.mxu0 0
        %881 = vmatprep.subr.bf16.mxu0 0
        %882 = vmatpush1.bf16.msra.mxu0 0
        %883 = vmatprep.subr.bf16.mxu0 0
        %884 = vmatpush1.bf16.msra.mxu0 0
        %885 = vmatprep.subr.bf16.mxu0 0
        %886 = vmatpush1.bf16.msra.mxu0 0
        %887 = vmatprep.subr.bf16.mxu0 0
        %888 = vmatpush1.bf16.msra.mxu0 0
        %889 = vmatprep.subr.bf16.mxu0 0
        %890 = vmatpush1.bf16.msra.mxu0 0
        %891 = vmatprep.subr.bf16.mxu0 0
        %892 = vmatpush1.bf16.msra.mxu0 0
        %893 = vmatprep.subr.bf16.mxu0 0
        %894 = vmatpush1.bf16.msra.mxu0 0
        %895 = vmatprep.subr.bf16.mxu0 0
        %896 = vmatpush1.bf16.msra.mxu0 0
        %897 = vmatprep.subr.bf16.mxu0 0
        %898 = vmatpush1.bf16.msra.mxu0 0
        %899 = vmatprep.subr.bf16.mxu0 0
        %900 = vmatpush1.bf16.msra.mxu0 0
        %901 = vmatprep.subr.bf16.mxu0 0
        %902 = vmatpush1.bf16.msra.mxu0 0
        %903 = vmatprep.mubr.bf16.mxu0 0
        %904 = vmatmul.mubr.bf16.gmra.mrb[0].mxu0 %v866
        %v905 = vpop.f32.mrb[0].mxu0
        %v906 = vadd.f32 0.0, %v905
        %v907 = vpop.f32.mrb[0].mxu0
        %v908 = vpop.f32.mrb[0].mxu0
        %v909 = vpop.f32.mrb[0].mxu0
        %910 = vdwg.mxu0
        %v911 = vadd.f32 %v863, %v906
        %912 = vst.msk [vmem:[#allocation2] sm:$0xff] %vm327, %v911
        %913 = vrot.lane.b32.xlu0 %v426, 104
        %v914 = vpop.permute.xlu0 %913
        %v916 = vsel %vm443, %v914, 0
        %918 = vmatprep.subr.bf16.mxu0 0
        %919 = vmatpush1.bf16.xpose.msra.mxu0 %v761
        %920 = vmatprep.subr.bf16.mxu0 0
        %921 = vmatpush1.bf16.xpose.msra.mxu0 0
        %922 = vmatprep.subr.bf16.mxu0 0
        %923 = vmatpush1.bf16.xpose.msra.mxu0 0
        %924 = vmatprep.subr.bf16.mxu0 0
        %925 = vmatpush1.bf16.xpose.msra.mxu0 0
        %926 = vmatprep.subr.bf16.mxu0 0
        %927 = vmatpush1.bf16.xpose.msra.mxu0 0
        %928 = vmatprep.subr.bf16.mxu0 0
        %929 = vmatpush1.bf16.xpose.msra.mxu0 0
        %930 = vmatprep.subr.bf16.mxu0 0
        %931 = vmatpush1.bf16.xpose.msra.mxu0 0
        %932 = vmatprep.subr.bf16.mxu0 0
        %933 = vmatpush1.bf16.xpose.msra.mxu0 0
        %934 = vmatprep.subr.bf16.mxu0 0
        %935 = vmatpush1.bf16.xpose.msra.mxu0 0
        %936 = vmatprep.subr.bf16.mxu0 0
        %937 = vmatpush1.bf16.xpose.msra.mxu0 0
        %938 = vmatprep.subr.bf16.mxu0 0
        %939 = vmatpush1.bf16.xpose.msra.mxu0 0
        %940 = vmatprep.subr.bf16.mxu0 0
        %941 = vmatpush1.bf16.xpose.msra.mxu0 0
        %942 = vmatprep.subr.bf16.mxu0 0
        %943 = vmatpush1.bf16.xpose.msra.mxu0 0
        %944 = vmatprep.subr.bf16.mxu0 0
        %945 = vmatpush1.bf16.xpose.msra.mxu0 0
        %946 = vmatprep.subr.bf16.mxu0 0
        %947 = vmatpush1.bf16.xpose.msra.mxu0 0
        %948 = vmatprep.subr.bf16.mxu0 0
        %949 = vmatpush1.bf16.xpose.msra.mxu0 0
        %950 = vmatprep.mubr.bf16.mxu0 0
        %951 = vmatmul.mubr.bf16.gmra.mrb[0].mxu0 %v916
        %v952 = vpop.f32.mrb[0].mxu0
        %v953 = vadd.f32 %v438, %v952
        %v954 = vpop.f32.mrb[0].mxu0
        %v955 = vpop.f32.mrb[0].mxu0
        %v956 = vpop.f32.mrb[0].mxu0
        %957 = vdwg.mxu0
        %v958 = vsel %vm443, %v953, -inf
        %959 = vmax.xlane.f32.xlu0 %v958
        %v960 = vpop.xlane.xlu0 %959
        %v961 = vsub.f32 %v953, %v960
        %v962 = vmul.f32 %v961, 1.442695
        %v963 = vpow.pop %v962
        %v964 = vsel %vm443, %v963, 0.0
        %965 = vadd.xlane.f32.xlu0 %v964
        %v966 = vpop.xlane.xlu0 %965
        %v967 = vpack.c.bf16 %v963, %v963
        %v969 = vsel %vm443, %v967, 0
        %971 = vmatprep.subr.bf16.mxu0 0
        %972 = vmatpush1.bf16.msra.mxu0 %v819
        %973 = vmatprep.subr.bf16.mxu0 0
        %974 = vmatpush1.bf16.msra.mxu0 0
        %975 = vmatprep.subr.bf16.mxu0 0
        %976 = vmatpush1.bf16.msra.mxu0 0
        %977 = vmatprep.subr.bf16.mxu0 0
        %978 = vmatpush1.bf16.msra.mxu0 0
        %979 = vmatprep.subr.bf16.mxu0 0
        %980 = vmatpush1.bf16.msra.mxu0 0
        %981 = vmatprep.subr.bf16.mxu0 0
        %982 = vmatpush1.bf16.msra.mxu0 0
        %983 = vmatprep.subr.bf16.mxu0 0
        %984 = vmatpush1.bf16.msra.mxu0 0
        %985 = vmatprep.subr.bf16.mxu0 0
        %986 = vmatpush1.bf16.msra.mxu0 0
        %987 = vmatprep.subr.bf16.mxu0 0
        %988 = vmatpush1.bf16.msra.mxu0 0
        %989 = vmatprep.subr.bf16.mxu0 0
        %990 = vmatpush1.bf16.msra.mxu0 0
        %991 = vmatprep.subr.bf16.mxu0 0
        %992 = vmatpush1.bf16.msra.mxu0 0
        %993 = vmatprep.subr.bf16.mxu0 0
        %994 = vmatpush1.bf16.msra.mxu0 0
        %995 = vmatprep.subr.bf16.mxu0 0
        %996 = vmatpush1.bf16.msra.mxu0 0
        %997 = vmatprep.subr.bf16.mxu0 0
        %998 = vmatpush1.bf16.msra.mxu0 0
        %999 = vmatprep.subr.bf16.mxu0 0
        %1000 = vmatpush1.bf16.msra.mxu0 0
        %1001 = vmatprep.subr.bf16.mxu0 0
        %1002 = vmatpush1.bf16.msra.mxu0 0
        %1003 = vmatprep.mubr.bf16.mxu0 0
        %1004 = vmatmul.mubr.bf16.gmra.mrb[0].mxu0 %v969
        %v1005 = vpop.f32.mrb[0].mxu0
        %v1006 = vadd.f32 0.0, %v1005
        %v1007 = vpop.f32.mrb[0].mxu0
        %v1008 = vpop.f32.mrb[0].mxu0
        %v1009 = vpop.f32.mrb[0].mxu0
        %1010 = vdwg.mxu0
        %v1011 = vrcp.pop %v966
        %v1012 = vmul.f32 %v1006, %v1011
        %v1013 = vld [vmem:[#allocation2] sm:$0xff]
        %v1014 = vpack.c.bf16 %v1012, %v1012
        %v1016 = vsel %vm443, %v1014, 0
        %v1019 = vsel %vm506, %v432, 0
        %1021 = vmatprep.subr.bf16.mxu0 0
        %1022 = vmatpush1.bf16.msra.mxu0 %v1019
        %1023 = vmatprep.subr.bf16.mxu0 0
        %1024 = vmatpush1.bf16.msra.mxu0 0
        %1025 = vmatprep.subr.bf16.mxu0 0
        %1026 = vmatpush1.bf16.msra.mxu0 0
        %1027 = vmatprep.subr.bf16.mxu0 0
        %1028 = vmatpush1.bf16.msra.mxu0 0
        %1029 = vmatprep.subr.bf16.mxu0 0
        %1030 = vmatpush1.bf16.msra.mxu0 0
        %1031 = vmatprep.subr.bf16.mxu0 0
        %1032 = vmatpush1.bf16.msra.mxu0 0
        %1033 = vmatprep.subr.bf16.mxu0 0
        %1034 = vmatpush1.bf16.msra.mxu0 0
        %1035 = vmatprep.subr.bf16.mxu0 0
        %1036 = vmatpush1.bf16.msra.mxu0 0
        %1037 = vmatprep.subr.bf16.mxu0 0
        %1038 = vmatpush1.bf16.msra.mxu0 0
        %1039 = vmatprep.subr.bf16.mxu0 0
        %1040 = vmatpush1.bf16.msra.mxu0 0
        %1041 = vmatprep.subr.bf16.mxu0 0
        %1042 = vmatpush1.bf16.msra.mxu0 0
        %1043 = vmatprep.subr.bf16.mxu0 0
        %1044 = vmatpush1.bf16.msra.mxu0 0
        %1045 = vmatprep.subr.bf16.mxu0 0
        %1046 = vmatpush1.bf16.msra.mxu0 0
        %1047 = vmatprep.subr.bf16.mxu0 0
        %1048 = vmatpush1.bf16.msra.mxu0 0
        %1049 = vmatprep.subr.bf16.mxu0 0
        %1050 = vmatpush1.bf16.msra.mxu0 0
        %1051 = vmatprep.subr.bf16.mxu0 0
        %1052 = vmatpush1.bf16.msra.mxu0 0
        %1053 = vmatprep.mubr.bf16.mxu0 0
        %1054 = vmatmul.mubr.bf16.gmra.mrb[0].mxu0 %v1016
        %v1055 = vpop.f32.mrb[0].mxu0
        %v1056 = vadd.f32 0.0, %v1055
        %v1057 = vpop.f32.mrb[0].mxu0
        %v1058 = vpop.f32.mrb[0].mxu0
        %v1059 = vpop.f32.mrb[0].mxu0
        %1060 = vdwg.mxu0
        %v1061 = vadd.f32 %v1013, %v1056
        %1062 = vst.msk [vmem:[#allocation2] sm:$0xff] %vm327, %v1061
        %v1063 = vld [vmem:[#allocation2] sm:$0xff]
        %1064 = vst.msk [vmem:[%s308] sm:$0xff] %vm327, %v1063
        %s1065 = sand.u32 %s164, 1
        %s1066 = scalar_lea.sflag [#allocation5], %s1065
        %s1067 = sand.u32 %s164, 1
        %s1068 = smul.addr %s1067, 8
        %s1069 = scalar_lea.vmem [#allocation11], %s1068
        // Predicated region
        $region61: #{tpu_custom_call.1} parent=43 // pred_check
          %p1070 = pneg %p174
        $region62: #{tpu_custom_call.1} parent=43 // pred_check_branch
          %1072 = sbr.rel (%p1070) target = $region64
        $region63: #{tpu_custom_call.1} parent=43 // pred_region
          %s1074 = ssub.s32 128, 128
          %1075 = vsyncadd %s1066, %s1074
          %s1076 = smul.addr %s25, 128
          %s1077 = scalar_lea.hbm %s6, %s1076
          %s1079 = sshll.u32 %s1069, 4
          %s1080 = int_to_ptr.vmem [resolvable:$true] %s1079
          %1082 = dma.vmem_to_hbm [thread:$0]  %s1080, 128, %s1077, %s1066
        $region64: #{tpu_custom_call.1} parent=43 // pred_fallthru
          _
      $region44: #{tpu_custom_call.1} parent=5 // pred_fallthru
        _
      %p1083 = scmp.le.s32.totalorder 2, %s20
      // Predicated region
      $region65: #{tpu_custom_call.1} parent=5 // pred_check
        %p1084 = pneg %p1083
      $region66: #{tpu_custom_call.1} parent=5 // pred_check_branch
        %1086 = sbr.rel (%p1084) target = $region68
      $region67: #{tpu_custom_call.1} parent=5 // pred_region
        %s1087 = ssub.s32 %s20, 2
        // Predicated region
        $region69: #{tpu_custom_call.1} parent=67 // pred_check
          %p1088 = pneg %p180
        $region70: #{tpu_custom_call.1} parent=67 // pred_check_branch
          %1090 = sbr.rel (%p1088) target = $region72
        $region71: #{tpu_custom_call.1} parent=67 // pred_region
          %s1091 = sand.u32 %s165, 1
          %s1092 = scalar_lea.sflag [#allocation5], %s1091
          %s1093 = sand.u32 %s165, 1
          %s1094 = smul.addr %s1093, 8
          %s1095 = scalar_lea.vmem [#allocation11], %s1094
          %1096 = dma.done %s1092, 128
        $region72: #{tpu_custom_call.1} parent=67 // pred_fallthru
          _
      $region68: #{tpu_custom_call.1} parent=5 // pred_fallthru
        _
    $region6: #{tpu_custom_call.1} parent=1 // loop_footer
      %s24 = sadd.s32 1, %s20
    $region7: #{tpu_custom_call.1} parent=1 // loop_footer_branch
      %19 = sbr.rel target = $region3
    $region8: #{tpu_custom_call.1} parent=1 // loop_exit
      _
    %1097 = vsyncpa [#allocation4], 1
    %s1098 = scalar_lea.sflag [#allocation4], 1
    %1099 = vsyncpa %s1098, 1
    %1100 = vsyncpa [#allocation7], 1
    %1101 = vsyncpa [#allocation10], 1
    %1102 = vsyncpa [#allocation5], 1
    %s1103 = scalar_lea.sflag [#allocation5], 1
    %1104 = vsyncpa %s1103, 1

</llo_original>
